<compile_context>
chip_gen: v6e
topology: v6e:2x2x1
jax: 0.10.0
libtpu: 0.0.40
codegen_flags: <defaults>
</compile_context>

<pallas_src>
import math
import numpy as np
import jax
import jax.numpy as jnp
from jax.experimental import pallas as pl
from jax.experimental.pallas import tpu as pltpu

# ---------------- model hyper-parameters (small, consistent with the module) ----
B         = 2          # batch_size
L         = 8          # src_len
D_MODEL   = 32         # d_model
HEADS     = 4          # heads
D_K       = 8          # d_k (per-head key/query dim)
D_V       = 8          # d_v (per-head value dim)
D_FF      = 64         # d_ff
GAU_DEPTH = 3          # Gau2Embedder depth
LN_EPS    = 1e-6       # c2nl LayerNorm eps
E_QKV     = HEADS * (2 * D_K + D_V)      # 96 fused QKV output columns

# ---- packed matrix slab (bf16, lane width 128; every row offset / extent is a
#      multiple of the bf16 (16,128) tile height) --------------------------------
ROW_GAU   = 0                                 # 3 x (32,32)
ROW_WQKV  = ROW_GAU + GAU_DEPTH * D_MODEL     # 96 : (32,96)
ROW_WO    = ROW_WQKV + D_MODEL                # 128: (32,32)
ROW_W1    = ROW_WO + HEADS * D_V              # 160: (32,64)
ROW_W2    = ROW_W1 + D_MODEL                  # 192: (64,32)
WMAT_ROWS = ROW_W2 + D_FF                     # 256

# ---- packed vector/bias slab (f32, one row each) --------------------------------
VROW_GAU_B = 0        # rows 0..2
VROW_BQKV  = 3
VROW_BO    = 4
VROW_LN1G  = 5
VROW_LN1B  = 6
VROW_LN2G  = 7
VROW_LN2B  = 8
VROW_B1    = 9
VROW_B2    = 10
WVEC_ROWS  = 16


def _layer_kernel(x_ref, mask_ref, wmat_ref, wvec_ref, out_ref, attn_ref):
    f32, bf16 = jnp.float32, jnp.bfloat16
    BL = B * L

    # ---- carve weights out of the two packed slabs (static, tile-aligned slices)
    gau_w = [wmat_ref[ROW_GAU + d * D_MODEL: ROW_GAU + (d + 1) * D_MODEL, :D_MODEL]
             for d in range(GAU_DEPTH)]                              # bf16 (32,32)
    wqkv = wmat_ref[ROW_WQKV:ROW_WQKV + D_MODEL, :E_QKV]             # bf16 (32,96)
    wo   = wmat_ref[ROW_WO:ROW_WO + HEADS * D_V, :D_MODEL]           # bf16 (32,32)
    w1   = wmat_ref[ROW_W1:ROW_W1 + D_MODEL, :D_FF]                  # bf16 (32,64)
    w2   = wmat_ref[ROW_W2:ROW_W2 + D_FF, :D_MODEL]                  # bf16 (64,32)

    gau_b = [wvec_ref[VROW_GAU_B + d:VROW_GAU_B + d + 1, :D_MODEL]
             for d in range(GAU_DEPTH)]                              # f32 (1,32)
    bqkv  = wvec_ref[VROW_BQKV:VROW_BQKV + 1, :E_QKV]                # (1,96)
    bo    = wvec_ref[VROW_BO:VROW_BO + 1, :D_MODEL]
    ln1_g = wvec_ref[VROW_LN1G:VROW_LN1G + 1, :D_MODEL]
    ln1_b = wvec_ref[VROW_LN1B:VROW_LN1B + 1, :D_MODEL]
    ln2_g = wvec_ref[VROW_LN2G:VROW_LN2G + 1, :D_MODEL]
    ln2_b = wvec_ref[VROW_LN2B:VROW_LN2B + 1, :D_MODEL]
    b1    = wvec_ref[VROW_B1:VROW_B1 + 1, :D_FF]
    b2    = wvec_ref[VROW_B2:VROW_B2 + 1, :D_MODEL]

    def mm(a, w_bf16):
        # bf16 MXU inputs, f32 accumulation.
        return jnp.dot(a.astype(bf16), w_bf16, preferred_element_type=f32)

    def layer_norm(z, g, b):
        # c2nl / OpenNMT LayerNorm: g*(x-mean)/(std+eps)+b with UNBIASED std.
        mu = jnp.mean(z, axis=-1, keepdims=True)
        c = z - mu
        var = jnp.sum(c * c, axis=-1, keepdims=True) * (1.0 / (D_MODEL - 1))
        return g * c / (jnp.sqrt(var) + LN_EPS) + b

    # ---- batch folded into the token axis: (B*L, D) -----------------------------
    x2d = x_ref[...].reshape(BL, D_MODEL)

    # ---------------- Gau2Embedder: hidden = inputs + gau(inputs) ----------------
    # TODO(synk): Gau2Embedder source is not provided; implemented as a
    # deterministic depth-3 tanh MLP with matching [*, D] -> [*, D] signature.
    h = x2d
    for d in range(GAU_DEPTH):
        h = jnp.tanh(mm(h, gau_w[d]) + gau_b[d])
    hidden = x2d + h                                                 # (BL, D)

    # ---------------- fused QKV projection: one (16,32)x(32,96) push -------------
    # 1/sqrt(d_k) is already folded into the Q columns / bias at pack time.
    qkv = mm(hidden, wqkv) + bqkv                                    # (BL, 96) f32

    # ---- split heads: (BL, H*dim) columns -> (B*H, L, dim), leading-axis stacks -
    def split_heads(col0, dim):
        parts = [qkv[bi * L:(bi + 1) * L, col0 + hh * dim: col0 + (hh + 1) * dim]
                 for bi in range(B) for hh in range(HEADS)]          # (L, dim) each
        return jnp.stack(parts, axis=0)                              # (B*H, L, dim)

    q3 = split_heads(0, D_K)
    k3 = split_heads(HEADS * D_K, D_K)
    v3 = split_heads(2 * HEADS * D_K, D_V)

    # ---------------- scores + additive mask + softmax, batched over (B, H) ------
    s = jnp.einsum('xqd,xkd->xqk', q3.astype(bf16), k3.astype(bf16),
                   preferred_element_type=f32)                       # (B*H, L, L)
    s4 = s.reshape(B, HEADS, L, L)
    bias = mask_ref[...].astype(f32) * (-1e18)                       # (B, L, L)
    s4 = s4 + bias[:, None, :, :]
    s4 = s4 - jnp.max(s4, axis=-1, keepdims=True)
    e = jnp.exp(s4)
    p4 = e / jnp.sum(e, axis=-1, keepdims=True)    # exact divide: rows sum to 1
    attn_ref[...] = p4                                               # (B, H, L, L)

    # ---------------- context, head-concat folded into one Wo matmul -------------
    ctx = jnp.einsum('xqk,xkd->xqd',
                     p4.reshape(B * HEADS, L, L).astype(bf16), v3.astype(bf16),
                     preferred_element_type=f32)                     # (B*H, L, dv)
    ctx4 = ctx.reshape(B, HEADS, L, D_V)
    ctx2d = jnp.concatenate(
        [ctx4[:, hh].reshape(BL, D_V) for hh in range(HEADS)], axis=1)  # (BL, H*dv)
    context = mm(ctx2d, wo) + bo                                     # (BL, D)

    # ---------------- residual + LayerNorm (dropout = identity) ------------------
    out1 = layer_norm(context + hidden, ln1_g, ln1_b)

    # ------- PositionwiseFeedForward (c2nl): w2(relu(w1(LN(x)))) + x -------------
    z = layer_norm(out1, ln2_g, ln2_b)
    inter = jnp.maximum(mm(z, w1) + b1, 0.0)
    ffn = mm(inter, w2) + b2
    out_ref[...] = (ffn + out1).reshape(B, L, D_MODEL).astype(out_ref.dtype)


def transformer_encoder_layer(inputs, mask, wmat, wvec):
    """inputs: f32[B, L, D]; mask: i32[B, L, L]; wmat/wvec: packed weight slabs.
    Returns (outputs f32[B, L, D], attn_per_head f32[B, HEADS, L, L])."""
    Bsz, Ls, Dm = inputs.shape
    assert (Bsz, Ls, Dm) == (B, L, D_MODEL)
    vmem = pltpu.MemorySpace.VMEM
    return pl.pallas_call(
        _layer_kernel,
        out_shape=(
            jax.ShapeDtypeStruct((B, L, D_MODEL), jnp.float32),
            jax.ShapeDtypeStruct((B, HEADS, L, L), jnp.float32),
        ),
        # No grid: whole problem (<100 KiB) resident in VMEM; 4 input DMAs total.
        in_specs=[pl.BlockSpec(memory_space=vmem)] * 4,
        out_specs=(pl.BlockSpec(memory_space=vmem),
                   pl.BlockSpec(memory_space=vmem)),
    )(inputs, mask, wmat, wvec)


def init_params(key):
    ks = jax.random.split(key, 8)

    def lin(k, fan_in, shape):
        return jax.random.normal(k, shape, jnp.float32) / np.sqrt(fan_in)

    return {
        # Gau2Embedder stand-in: depth stacked (D, D) linears
        "gau_w": lin(ks[0], D_MODEL, (GAU_DEPTH, D_MODEL, D_MODEL)),
        "gau_b": jnp.zeros((GAU_DEPTH, D_MODEL), jnp.float32),
        # QKV projections (columns head-major: col = h*d_k + d)
        "wq": lin(ks[1], D_MODEL, (D_MODEL, HEADS * D_K)),
        "wk": lin(ks[2], D_MODEL, (D_MODEL, HEADS * D_K)),
        "wv": lin(ks[3], D_MODEL, (D_MODEL, HEADS * D_V)),
        "bq": jnp.zeros((HEADS * D_K,), jnp.float32),
        "bk": jnp.zeros((HEADS * D_K,), jnp.float32),
        "bv": jnp.zeros((HEADS * D_V,), jnp.float32),
        # output projection (rows head-major: row = h*d_v + d)
        "wo": lin(ks[4], HEADS * D_V, (HEADS * D_V, D_MODEL)),
        "bo": jnp.zeros((D_MODEL,), jnp.float32),
        # post-attention LayerNorm + FFN-internal LayerNorm
        "ln1_g": jnp.ones((D_MODEL,), jnp.float32),
        "ln1_b": jnp.zeros((D_MODEL,), jnp.float32),
        "ln2_g": jnp.ones((D_MODEL,), jnp.float32),
        "ln2_b": jnp.zeros((D_MODEL,), jnp.float32),
        # FFN linears
        "w1": lin(ks[5], D_MODEL, (D_MODEL, D_FF)),
        "b1": jnp.zeros((D_FF,), jnp.float32),
        "w2": lin(ks[6], D_FF, (D_FF, D_MODEL)),
        "b2": jnp.zeros((D_MODEL,), jnp.float32),
    }


def pack_params(p):
    """One-time host-side packing: fold the query scale, fuse QKV columns and
    pack everything into a bf16 matrix slab + an f32 vector slab."""
    scale = jnp.float32(1.0 / math.sqrt(D_K))
    wqkv = jnp.concatenate([p["wq"] * scale, p["wk"], p["wv"]], axis=1)   # (32,96)
    bqkv = jnp.concatenate([p["bq"] * scale, p["bk"], p["bv"]])           # (96,)

    wmat = jnp.zeros((WMAT_ROWS, 128), jnp.float32)

    def put(slab, row, mat):
        return slab.at[row:row + mat.shape[0], :mat.shape[1]].set(mat)

    for d in range(GAU_DEPTH):
        wmat = put(wmat, ROW_GAU + d * D_MODEL, p["gau_w"][d])
    wmat = put(wmat, ROW_WQKV, wqkv)
    wmat = put(wmat, ROW_WO, p["wo"])
    wmat = put(wmat, ROW_W1, p["w1"])
    wmat = put(wmat, ROW_W2, p["w2"])
    wmat = wmat.astype(jnp.bfloat16)

    wvec = jnp.zeros((WVEC_ROWS, 128), jnp.float32)
    rows = {
        VROW_GAU_B + 0: p["gau_b"][0], VROW_GAU_B + 1: p["gau_b"][1],
        VROW_GAU_B + 2: p["gau_b"][2],
        VROW_BQKV: bqkv, VROW_BO: p["bo"],
        VROW_LN1G: p["ln1_g"], VROW_LN1B: p["ln1_b"],
        VROW_LN2G: p["ln2_g"], VROW_LN2B: p["ln2_b"],
        VROW_B1: p["b1"], VROW_B2: p["b2"],
    }
    for r, v in rows.items():
        wvec = wvec.at[r, :v.shape[0]].set(v)
    return wmat, wvec


if __name__ == "__main__":
    key = jax.random.PRNGKey(0)
    k_x, k_p = jax.random.split(key)

    inputs = jax.random.normal(k_x, (B, L, D_MODEL), jnp.float32)

    # padding mask: batch 0 has no padding, batch 1 has its last 2 keys padded.
    pad = jnp.zeros((B, L), jnp.int32).at[1, L - 2:].set(1)      # 1 = pad
    mask = jnp.broadcast_to(pad[:, None, :], (B, L, L)).astype(jnp.int32)

    params = init_params(k_p)
    wmat, wvec = pack_params(params)
    jax.block_until_ready((wmat, wvec))

    out, attn_per_head = transformer_encoder_layer(inputs, mask, wmat, wvec)
    jax.block_until_ready((out, attn_per_head))

    assert out.shape == (B, L, D_MODEL)
    assert attn_per_head.shape == (B, HEADS, L, L)
    assert bool(jnp.all(jnp.isfinite(out)))
    assert bool(jnp.all(jnp.isfinite(attn_per_head)))
    # softmax rows must sum to 1 (exact divide in-kernel)
    assert bool(jnp.allclose(jnp.sum(attn_per_head, axis=-1), 1.0, atol=1e-4))
    print("KERNEL_OK")
</pallas_src>

<mosaic_0001>
module attributes {stable_mosaic.version = 11 : i64} {
  func.func @_layer_kernel(%arg0: memref<2x8x32xf32, #tpu.memory_space<vmem>>, %arg1: memref<2x8x8xi32, #tpu.memory_space<vmem>>, %arg2: memref<256x128xbf16, #tpu.memory_space<vmem>>, %arg3: memref<16x128xf32, #tpu.memory_space<vmem>>, %arg4: memref<2x8x32xf32, #tpu.memory_space<vmem>>, %arg5: memref<2x4x8x8xf32, #tpu.memory_space<vmem>>) attributes {dimension_semantics = [], scalar_prefetch = 0 : i64, scratch_operands = 0 : i64, tpu.core_type = #tpu.core_type<tc>} {
    %c0 = arith.constant 0 : index
    %c0_0 = arith.constant 0 : index
    %0 = vector.load %arg2[%c0, %c0_0] : memref<256x128xbf16, #tpu.memory_space<vmem>>, vector<32x32xbf16>
    %c32 = arith.constant 32 : index
    %c0_1 = arith.constant 0 : index
    %1 = vector.load %arg2[%c32, %c0_1] : memref<256x128xbf16, #tpu.memory_space<vmem>>, vector<32x32xbf16>
    %c64 = arith.constant 64 : index
    %c0_2 = arith.constant 0 : index
    %2 = vector.load %arg2[%c64, %c0_2] : memref<256x128xbf16, #tpu.memory_space<vmem>>, vector<32x32xbf16>
    %c96 = arith.constant 96 : index
    %c0_3 = arith.constant 0 : index
    %3 = vector.load %arg2[%c96, %c0_3] : memref<256x128xbf16, #tpu.memory_space<vmem>>, vector<32x96xbf16>
    %c128 = arith.constant 128 : index
    %c0_4 = arith.constant 0 : index
    %4 = vector.load %arg2[%c128, %c0_4] : memref<256x128xbf16, #tpu.memory_space<vmem>>, vector<32x32xbf16>
    %c160 = arith.constant 160 : index
    %c0_5 = arith.constant 0 : index
    %5 = vector.load %arg2[%c160, %c0_5] : memref<256x128xbf16, #tpu.memory_space<vmem>>, vector<32x64xbf16>
    %c192 = arith.constant 192 : index
    %c0_6 = arith.constant 0 : index
    %6 = vector.load %arg2[%c192, %c0_6] : memref<256x128xbf16, #tpu.memory_space<vmem>>, vector<64x32xbf16>
    %c0_7 = arith.constant 0 : index
    %c0_8 = arith.constant 0 : index
    %7 = vector.load %arg3[%c0_7, %c0_8] : memref<16x128xf32, #tpu.memory_space<vmem>>, vector<1x32xf32>
    %c1 = arith.constant 1 : index
    %c0_9 = arith.constant 0 : index
    %8 = vector.load %arg3[%c1, %c0_9] : memref<16x128xf32, #tpu.memory_space<vmem>>, vector<1x32xf32>
    %c2 = arith.constant 2 : index
    %c0_10 = arith.constant 0 : index
    %9 = vector.load %arg3[%c2, %c0_10] : memref<16x128xf32, #tpu.memory_space<vmem>>, vector<1x32xf32>
    %c3 = arith.constant 3 : index
    %c0_11 = arith.constant 0 : index
    %10 = vector.load %arg3[%c3, %c0_11] : memref<16x128xf32, #tpu.memory_space<vmem>>, vector<1x96xf32>
    %c4 = arith.constant 4 : index
    %c0_12 = arith.constant 0 : index
    %11 = vector.load %arg3[%c4, %c0_12] : memref<16x128xf32, #tpu.memory_space<vmem>>, vector<1x32xf32>
    %c5 = arith.constant 5 : index
    %c0_13 = arith.constant 0 : index
    %12 = vector.load %arg3[%c5, %c0_13] : memref<16x128xf32, #tpu.memory_space<vmem>>, vector<1x32xf32>
    %c6 = arith.constant 6 : index
    %c0_14 = arith.constant 0 : index
    %13 = vector.load %arg3[%c6, %c0_14] : memref<16x128xf32, #tpu.memory_space<vmem>>, vector<1x32xf32>
    %c7 = arith.constant 7 : index
    %c0_15 = arith.constant 0 : index
    %14 = vector.load %arg3[%c7, %c0_15] : memref<16x128xf32, #tpu.memory_space<vmem>>, vector<1x32xf32>
    %c8 = arith.constant 8 : index
    %c0_16 = arith.constant 0 : index
    %15 = vector.load %arg3[%c8, %c0_16] : memref<16x128xf32, #tpu.memory_space<vmem>>, vector<1x32xf32>
    %c9 = arith.constant 9 : index
    %c0_17 = arith.constant 0 : index
    %16 = vector.load %arg3[%c9, %c0_17] : memref<16x128xf32, #tpu.memory_space<vmem>>, vector<1x64xf32>
    %c10 = arith.constant 10 : index
    %c0_18 = arith.constant 0 : index
    %17 = vector.load %arg3[%c10, %c0_18] : memref<16x128xf32, #tpu.memory_space<vmem>>, vector<1x32xf32>
    %c0_19 = arith.constant 0 : index
    %c0_20 = arith.constant 0 : index
    %c0_21 = arith.constant 0 : index
    %18 = vector.load %arg0[%c0_19, %c0_20, %c0_21] : memref<2x8x32xf32, #tpu.memory_space<vmem>>, vector<2x8x32xf32>
    %19 = vector.shape_cast %18 : vector<2x8x32xf32> to vector<16x32xf32>
    %20 = arith.truncf %19 : vector<16x32xf32> to vector<16x32xbf16>
    %cst = arith.constant dense<0.000000e+00> : vector<16x32xf32>
    %21 = tpu.matmul %20, %0, %cst {dimension_numbers = #tpu.dot_dimension_numbers<[1], [0], [0], [1], [0, 0, 1, 1], [], []>} : vector<16x32xbf16>, vector<32x32xbf16>, vector<16x32xf32> -> vector<16x32xf32>
    %22 = vector.broadcast %7 : vector<1x32xf32> to vector<16x32xf32>
    %23 = arith.addf %21, %22 : vector<16x32xf32>
    %24 = math.tanh %23 : vector<16x32xf32>
    %25 = arith.truncf %24 : vector<16x32xf32> to vector<16x32xbf16>
    %cst_22 = arith.constant dense<0.000000e+00> : vector<16x32xf32>
    %26 = tpu.matmul %25, %1, %cst_22 {dimension_numbers = #tpu.dot_dimension_numbers<[1], [0], [0], [1], [0, 0, 1, 1], [], []>} : vector<16x32xbf16>, vector<32x32xbf16>, vector<16x32xf32> -> vector<16x32xf32>
    %27 = vector.broadcast %8 : vector<1x32xf32> to vector<16x32xf32>
    %28 = arith.addf %26, %27 : vector<16x32xf32>
    %29 = math.tanh %28 : vector<16x32xf32>
    %30 = arith.truncf %29 : vector<16x32xf32> to vector<16x32xbf16>
    %cst_23 = arith.constant dense<0.000000e+00> : vector<16x32xf32>
    %31 = tpu.matmul %30, %2, %cst_23 {dimension_numbers = #tpu.dot_dimension_numbers<[1], [0], [0], [1], [0, 0, 1, 1], [], []>} : vector<16x32xbf16>, vector<32x32xbf16>, vector<16x32xf32> -> vector<16x32xf32>
    %32 = vector.broadcast %9 : vector<1x32xf32> to vector<16x32xf32>
    %33 = arith.addf %31, %32 : vector<16x32xf32>
    %34 = math.tanh %33 : vector<16x32xf32>
    %35 = arith.addf %19, %34 : vector<16x32xf32>
    %36 = arith.truncf %35 : vector<16x32xf32> to vector<16x32xbf16>
    %cst_24 = arith.constant dense<0.000000e+00> : vector<16x96xf32>
    %37 = tpu.matmul %36, %3, %cst_24 {dimension_numbers = #tpu.dot_dimension_numbers<[1], [0], [0], [1], [0, 0, 1, 1], [], []>} : vector<16x32xbf16>, vector<32x96xbf16>, vector<16x96xf32> -> vector<16x96xf32>
    %38 = vector.broadcast %10 : vector<1x96xf32> to vector<16x96xf32>
    %39 = arith.addf %37, %38 : vector<16x96xf32>
    %40 = vector.extract_strided_slice %39 {offsets = [0, 0], sizes = [8, 8], strides = [1, 1]} : vector<16x96xf32> to vector<8x8xf32>
    %41 = vector.extract_strided_slice %39 {offsets = [0, 8], sizes = [8, 8], strides = [1, 1]} : vector<16x96xf32> to vector<8x8xf32>
    %42 = vector.extract_strided_slice %39 {offsets = [0, 16], sizes = [8, 8], strides = [1, 1]} : vector<16x96xf32> to vector<8x8xf32>
    %43 = vector.extract_strided_slice %39 {offsets = [0, 24], sizes = [8, 8], strides = [1, 1]} : vector<16x96xf32> to vector<8x8xf32>
    %44 = vector.extract_strided_slice %39 {offsets = [8, 0], sizes = [8, 8], strides = [1, 1]} : vector<16x96xf32> to vector<8x8xf32>
    %45 = vector.extract_strided_slice %39 {offsets = [8, 8], sizes = [8, 8], strides = [1, 1]} : vector<16x96xf32> to vector<8x8xf32>
    %46 = vector.extract_strided_slice %39 {offsets = [8, 16], sizes = [8, 8], strides = [1, 1]} : vector<16x96xf32> to vector<8x8xf32>
    %47 = vector.extract_strided_slice %39 {offsets = [8, 24], sizes = [8, 8], strides = [1, 1]} : vector<16x96xf32> to vector<8x8xf32>
    %48 = vector.shape_cast %40 : vector<8x8xf32> to vector<1x8x8xf32>
    %49 = vector.shape_cast %41 : vector<8x8xf32> to vector<1x8x8xf32>
    %50 = vector.shape_cast %42 : vector<8x8xf32> to vector<1x8x8xf32>
    %51 = vector.shape_cast %43 : vector<8x8xf32> to vector<1x8x8xf32>
    %52 = vector.shape_cast %44 : vector<8x8xf32> to vector<1x8x8xf32>
    %53 = vector.shape_cast %45 : vector<8x8xf32> to vector<1x8x8xf32>
    %54 = vector.shape_cast %46 : vector<8x8xf32> to vector<1x8x8xf32>
    %55 = vector.shape_cast %47 : vector<8x8xf32> to vector<1x8x8xf32>
    %56 = tpu.concatenate %48, %49, %50, %51, %52, %53, %54, %55 in 0 : vector<1x8x8xf32>, vector<1x8x8xf32>, vector<1x8x8xf32>, vector<1x8x8xf32>, vector<1x8x8xf32>, vector<1x8x8xf32>, vector<1x8x8xf32>, vector<1x8x8xf32> -> vector<8x8x8xf32>
    %57 = vector.extract_strided_slice %39 {offsets = [0, 32], sizes = [8, 8], strides = [1, 1]} : vector<16x96xf32> to vector<8x8xf32>
    %58 = vector.extract_strided_slice %39 {offsets = [0, 40], sizes = [8, 8], strides = [1, 1]} : vector<16x96xf32> to vector<8x8xf32>
    %59 = vector.extract_strided_slice %39 {offsets = [0, 48], sizes = [8, 8], strides = [1, 1]} : vector<16x96xf32> to vector<8x8xf32>
    %60 = vector.extract_strided_slice %39 {offsets = [0, 56], sizes = [8, 8], strides = [1, 1]} : vector<16x96xf32> to vector<8x8xf32>
    %61 = vector.extract_strided_slice %39 {offsets = [8, 32], sizes = [8, 8], strides = [1, 1]} : vector<16x96xf32> to vector<8x8xf32>
    %62 = vector.extract_strided_slice %39 {offsets = [8, 40], sizes = [8, 8], strides = [1, 1]} : vector<16x96xf32> to vector<8x8xf32>
    %63 = vector.extract_strided_slice %39 {offsets = [8, 48], sizes = [8, 8], strides = [1, 1]} : vector<16x96xf32> to vector<8x8xf32>
    %64 = vector.extract_strided_slice %39 {offsets = [8, 56], sizes = [8, 8], strides = [1, 1]} : vector<16x96xf32> to vector<8x8xf32>
    %65 = vector.shape_cast %57 : vector<8x8xf32> to vector<1x8x8xf32>
    %66 = vector.shape_cast %58 : vector<8x8xf32> to vector<1x8x8xf32>
    %67 = vector.shape_cast %59 : vector<8x8xf32> to vector<1x8x8xf32>
    %68 = vector.shape_cast %60 : vector<8x8xf32> to vector<1x8x8xf32>
    %69 = vector.shape_cast %61 : vector<8x8xf32> to vector<1x8x8xf32>
    %70 = vector.shape_cast %62 : vector<8x8xf32> to vector<1x8x8xf32>
    %71 = vector.shape_cast %63 : vector<8x8xf32> to vector<1x8x8xf32>
    %72 = vector.shape_cast %64 : vector<8x8xf32> to vector<1x8x8xf32>
    %73 = tpu.concatenate %65, %66, %67, %68, %69, %70, %71, %72 in 0 : vector<1x8x8xf32>, vector<1x8x8xf32>, vector<1x8x8xf32>, vector<1x8x8xf32>, vector<1x8x8xf32>, vector<1x8x8xf32>, vector<1x8x8xf32>, vector<1x8x8xf32> -> vector<8x8x8xf32>
    %74 = vector.extract_strided_slice %39 {offsets = [0, 64], sizes = [8, 8], strides = [1, 1]} : vector<16x96xf32> to vector<8x8xf32>
    %75 = vector.extract_strided_slice %39 {offsets = [0, 72], sizes = [8, 8], strides = [1, 1]} : vector<16x96xf32> to vector<8x8xf32>
    %76 = vector.extract_strided_slice %39 {offsets = [0, 80], sizes = [8, 8], strides = [1, 1]} : vector<16x96xf32> to vector<8x8xf32>
    %77 = vector.extract_strided_slice %39 {offsets = [0, 88], sizes = [8, 8], strides = [1, 1]} : vector<16x96xf32> to vector<8x8xf32>
    %78 = vector.extract_strided_slice %39 {offsets = [8, 64], sizes = [8, 8], strides = [1, 1]} : vector<16x96xf32> to vector<8x8xf32>
    %79 = vector.extract_strided_slice %39 {offsets = [8, 72], sizes = [8, 8], strides = [1, 1]} : vector<16x96xf32> to vector<8x8xf32>
    %80 = vector.extract_strided_slice %39 {offsets = [8, 80], sizes = [8, 8], strides = [1, 1]} : vector<16x96xf32> to vector<8x8xf32>
    %81 = vector.extract_strided_slice %39 {offsets = [8, 88], sizes = [8, 8], strides = [1, 1]} : vector<16x96xf32> to vector<8x8xf32>
    %82 = vector.shape_cast %74 : vector<8x8xf32> to vector<1x8x8xf32>
    %83 = vector.shape_cast %75 : vector<8x8xf32> to vector<1x8x8xf32>
    %84 = vector.shape_cast %76 : vector<8x8xf32> to vector<1x8x8xf32>
    %85 = vector.shape_cast %77 : vector<8x8xf32> to vector<1x8x8xf32>
    %86 = vector.shape_cast %78 : vector<8x8xf32> to vector<1x8x8xf32>
    %87 = vector.shape_cast %79 : vector<8x8xf32> to vector<1x8x8xf32>
    %88 = vector.shape_cast %80 : vector<8x8xf32> to vector<1x8x8xf32>
    %89 = vector.shape_cast %81 : vector<8x8xf32> to vector<1x8x8xf32>
    %90 = tpu.concatenate %82, %83, %84, %85, %86, %87, %88, %89 in 0 : vector<1x8x8xf32>, vector<1x8x8xf32>, vector<1x8x8xf32>, vector<1x8x8xf32>, vector<1x8x8xf32>, vector<1x8x8xf32>, vector<1x8x8xf32>, vector<1x8x8xf32> -> vector<8x8x8xf32>
    %91 = arith.truncf %56 : vector<8x8x8xf32> to vector<8x8x8xbf16>
    %92 = arith.truncf %73 : vector<8x8x8xf32> to vector<8x8x8xbf16>
    "tpu.trace_start"() <{level = 10 : i32, message = "xqd,xkd->xqk"}> : () -> ()
    %cst_25 = arith.constant dense<0.000000e+00> : vector<8x8x8xf32>
    %93 = tpu.matmul %91, %92, %cst_25 {dimension_numbers = #tpu.dot_dimension_numbers<[2], [2], [1], [1], [0, 0, 0, 1, 1, 1], [0], [0]>} : vector<8x8x8xbf16>, vector<8x8x8xbf16>, vector<8x8x8xf32> -> vector<8x8x8xf32>
    "tpu.trace_stop"() : () -> ()
    %94 = vector.shape_cast %93 : vector<8x8x8xf32> to vector<2x4x8x8xf32>
    %c0_26 = arith.constant 0 : index
    %c0_27 = arith.constant 0 : index
    %c0_28 = arith.constant 0 : index
    %95 = vector.load %arg1[%c0_26, %c0_27, %c0_28] : memref<2x8x8xi32, #tpu.memory_space<vmem>>, vector<2x8x8xi32>
    %96 = arith.sitofp %95 : vector<2x8x8xi32> to vector<2x8x8xf32>
    %cst_29 = arith.constant -9.99999984E+17 : f32
    %97 = vector.broadcast %cst_29 : f32 to vector<2x8x8xf32>
    %98 = arith.mulf %96, %97 : vector<2x8x8xf32>
    %99 = vector.shape_cast %98 : vector<2x8x8xf32> to vector<2x1x8x8xf32>
    %100 = vector.broadcast %99 : vector<2x1x8x8xf32> to vector<2x4x8x8xf32>
    %101 = arith.addf %94, %100 : vector<2x4x8x8xf32>
    %cst_30 = arith.constant dense<0xFF800000> : vector<2x4x8xf32>
    %102 = vector.multi_reduction <maximumf>, %101, %cst_30 [3] : vector<2x4x8x8xf32> to vector<2x4x8xf32>
    %103 = vector.shape_cast %102 : vector<2x4x8xf32> to vector<2x4x8x1xf32>
    %104 = vector.broadcast %103 : vector<2x4x8x1xf32> to vector<2x4x8x8xf32>
    %105 = arith.subf %101, %104 : vector<2x4x8x8xf32>
    %106 = math.exp %105 : vector<2x4x8x8xf32>
    %cst_31 = arith.constant dense<0.000000e+00> : vector<2x4x8xf32>
    %107 = vector.multi_reduction <add>, %106, %cst_31 [3] : vector<2x4x8x8xf32> to vector<2x4x8xf32>
    %108 = vector.shape_cast %107 : vector<2x4x8xf32> to vector<2x4x8x1xf32>
    %109 = vector.broadcast %108 : vector<2x4x8x1xf32> to vector<2x4x8x8xf32>
    %110 = arith.divf %106, %109 : vector<2x4x8x8xf32>
    %c0_32 = arith.constant 0 : index
    %c0_33 = arith.constant 0 : index
    %c0_34 = arith.constant 0 : index
    %c0_35 = arith.constant 0 : index
    %111 = vector.load %arg5[%c0_32, %c0_33, %c0_34, %c0_35] : memref<2x4x8x8xf32, #tpu.memory_space<vmem>>, vector<2x4x8x8xf32>
    tpu.vector_store %arg5[%c0_32, %c0_33, %c0_34, %c0_35], %110 {strides = array<i32>} : memref<2x4x8x8xf32, #tpu.memory_space<vmem>>, vector<2x4x8x8xf32>,
    %112 = vector.shape_cast %110 : vector<2x4x8x8xf32> to vector<8x8x8xf32>
    %113 = arith.truncf %112 : vector<8x8x8xf32> to vector<8x8x8xbf16>
    %114 = arith.truncf %90 : vector<8x8x8xf32> to vector<8x8x8xbf16>
    "tpu.trace_start"() <{level = 10 : i32, message = "xqk,xkd->xqd"}> : () -> ()
    %cst_36 = arith.constant dense<0.000000e+00> : vector<8x8x8xf32>
    %115 = tpu.matmul %113, %114, %cst_36 {dimension_numbers = #tpu.dot_dimension_numbers<[2], [1], [1], [2], [0, 0, 0, 1, 1, 2], [0], [0]>} : vector<8x8x8xbf16>, vector<8x8x8xbf16>, vector<8x8x8xf32> -> vector<8x8x8xf32>
    "tpu.trace_stop"() : () -> ()
    %116 = vector.shape_cast %115 : vector<8x8x8xf32> to vector<2x4x8x8xf32>
    %117 = vector.extract_strided_slice %116 {offsets = [0, 0, 0, 0], sizes = [2, 1, 8, 8], strides = [1, 1, 1, 1]} : vector<2x4x8x8xf32> to vector<2x1x8x8xf32>
    %118 = vector.shape_cast %117 : vector<2x1x8x8xf32> to vector<2x8x8xf32>
    %119 = vector.shape_cast %118 : vector<2x8x8xf32> to vector<16x8xf32>
    %120 = vector.extract_strided_slice %116 {offsets = [0, 1, 0, 0], sizes = [2, 1, 8, 8], strides = [1, 1, 1, 1]} : vector<2x4x8x8xf32> to vector<2x1x8x8xf32>
    %121 = vector.shape_cast %120 : vector<2x1x8x8xf32> to vector<2x8x8xf32>
    %122 = vector.shape_cast %121 : vector<2x8x8xf32> to vector<16x8xf32>
    %123 = vector.extract_strided_slice %116 {offsets = [0, 2, 0, 0], sizes = [2, 1, 8, 8], strides = [1, 1, 1, 1]} : vector<2x4x8x8xf32> to vector<2x1x8x8xf32>
    %124 = vector.shape_cast %123 : vector<2x1x8x8xf32> to vector<2x8x8xf32>
    %125 = vector.shape_cast %124 : vector<2x8x8xf32> to vector<16x8xf32>
    %126 = vector.extract_strided_slice %116 {offsets = [0, 3, 0, 0], sizes = [2, 1, 8, 8], strides = [1, 1, 1, 1]} : vector<2x4x8x8xf32> to vector<2x1x8x8xf32>
    %127 = vector.shape_cast %126 : vector<2x1x8x8xf32> to vector<2x8x8xf32>
    %128 = vector.shape_cast %127 : vector<2x8x8xf32> to vector<16x8xf32>
    %129 = tpu.concatenate %119, %122, %125, %128 in 1 : vector<16x8xf32>, vector<16x8xf32>, vector<16x8xf32>, vector<16x8xf32> -> vector<16x32xf32>
    %130 = arith.truncf %129 : vector<16x32xf32> to vector<16x32xbf16>
    %cst_37 = arith.constant dense<0.000000e+00> : vector<16x32xf32>
    %131 = tpu.matmul %130, %4, %cst_37 {dimension_numbers = #tpu.dot_dimension_numbers<[1], [0], [0], [1], [0, 0, 1, 1], [], []>} : vector<16x32xbf16>, vector<32x32xbf16>, vector<16x32xf32> -> vector<16x32xf32>
    %132 = vector.broadcast %11 : vector<1x32xf32> to vector<16x32xf32>
    %133 = arith.addf %131, %132 : vector<16x32xf32>
    %134 = arith.addf %133, %35 : vector<16x32xf32>
    %cst_38 = arith.constant dense<0.000000e+00> : vector<16xf32>
    %135 = vector.multi_reduction <add>, %134, %cst_38 [1] : vector<16x32xf32> to vector<16xf32>
    %136 = vector.shape_cast %135 : vector<16xf32> to vector<16x1xf32>
    %cst_39 = arith.constant 3.200000e+01 : f32
    %137 = vector.broadcast %cst_39 : f32 to vector<16x1xf32>
    %138 = arith.divf %136, %137 : vector<16x1xf32>
    %139 = vector.broadcast %138 : vector<16x1xf32> to vector<16x32xf32>
    %140 = arith.subf %134, %139 : vector<16x32xf32>
    %141 = arith.mulf %140, %140 : vector<16x32xf32>
    %cst_40 = arith.constant dense<0.000000e+00> : vector<16xf32>
    %142 = vector.multi_reduction <add>, %141, %cst_40 [1] : vector<16x32xf32> to vector<16xf32>
    %143 = vector.shape_cast %142 : vector<16xf32> to vector<16x1xf32>
    %cst_41 = arith.constant 0.0322580636 : f32
    %144 = vector.broadcast %cst_41 : f32 to vector<16x1xf32>
    %145 = arith.mulf %143, %144 : vector<16x1xf32>
    %146 = vector.broadcast %12 : vector<1x32xf32> to vector<16x32xf32>
    %147 = arith.mulf %146, %140 : vector<16x32xf32>
    %148 = math.sqrt %145 : vector<16x1xf32>
    %cst_42 = arith.constant 9.99999997E-7 : f32
    %149 = vector.broadcast %cst_42 : f32 to vector<16x1xf32>
    %150 = arith.addf %148, %149 : vector<16x1xf32>
    %151 = vector.broadcast %150 : vector<16x1xf32> to vector<16x32xf32>
    %152 = arith.divf %147, %151 : vector<16x32xf32>
    %153 = vector.broadcast %13 : vector<1x32xf32> to vector<16x32xf32>
    %154 = arith.addf %152, %153 : vector<16x32xf32>
    %cst_43 = arith.constant dense<0.000000e+00> : vector<16xf32>
    %155 = vector.multi_reduction <add>, %154, %cst_43 [1] : vector<16x32xf32> to vector<16xf32>
    %156 = vector.shape_cast %155 : vector<16xf32> to vector<16x1xf32>
    %cst_44 = arith.constant 3.200000e+01 : f32
    %157 = vector.broadcast %cst_44 : f32 to vector<16x1xf32>
    %158 = arith.divf %156, %157 : vector<16x1xf32>
    %159 = vector.broadcast %158 : vector<16x1xf32> to vector<16x32xf32>
    %160 = arith.subf %154, %159 : vector<16x32xf32>
    %161 = arith.mulf %160, %160 : vector<16x32xf32>
    %cst_45 = arith.constant dense<0.000000e+00> : vector<16xf32>
    %162 = vector.multi_reduction <add>, %161, %cst_45 [1] : vector<16x32xf32> to vector<16xf32>
    %163 = vector.shape_cast %162 : vector<16xf32> to vector<16x1xf32>
    %cst_46 = arith.constant 0.0322580636 : f32
    %164 = vector.broadcast %cst_46 : f32 to vector<16x1xf32>
    %165 = arith.mulf %163, %164 : vector<16x1xf32>
    %166 = vector.broadcast %14 : vector<1x32xf32> to vector<16x32xf32>
    %167 = arith.mulf %166, %160 : vector<16x32xf32>
    %168 = math.sqrt %165 : vector<16x1xf32>
    %cst_47 = arith.constant 9.99999997E-7 : f32
    %169 = vector.broadcast %cst_47 : f32 to vector<16x1xf32>
    %170 = arith.addf %168, %169 : vector<16x1xf32>
    %171 = vector.broadcast %170 : vector<16x1xf32> to vector<16x32xf32>
    %172 = arith.divf %167, %171 : vector<16x32xf32>
    %173 = vector.broadcast %15 : vector<1x32xf32> to vector<16x32xf32>
    %174 = arith.addf %172, %173 : vector<16x32xf32>
    %175 = arith.truncf %174 : vector<16x32xf32> to vector<16x32xbf16>
    %cst_48 = arith.constant dense<0.000000e+00> : vector<16x64xf32>
    %176 = tpu.matmul %175, %5, %cst_48 {dimension_numbers = #tpu.dot_dimension_numbers<[1], [0], [0], [1], [0, 0, 1, 1], [], []>} : vector<16x32xbf16>, vector<32x64xbf16>, vector<16x64xf32> -> vector<16x64xf32>
    %177 = vector.broadcast %16 : vector<1x64xf32> to vector<16x64xf32>
    %178 = arith.addf %176, %177 : vector<16x64xf32>
    %cst_49 = arith.constant 0.000000e+00 : f32
    %179 = vector.broadcast %cst_49 : f32 to vector<16x64xf32>
    %180 = arith.maximumf %178, %179 : vector<16x64xf32>
    %181 = arith.truncf %180 : vector<16x64xf32> to vector<16x64xbf16>
    %cst_50 = arith.constant dense<0.000000e+00> : vector<16x32xf32>
    %182 = tpu.matmul %181, %6, %cst_50 {dimension_numbers = #tpu.dot_dimension_numbers<[1], [0], [0], [1], [0, 0, 1, 1], [], []>} : vector<16x64xbf16>, vector<64x32xbf16>, vector<16x32xf32> -> vector<16x32xf32>
    %183 = vector.broadcast %17 : vector<1x32xf32> to vector<16x32xf32>
    %184 = arith.addf %182, %183 : vector<16x32xf32>
    %185 = arith.addf %184, %154 : vector<16x32xf32>
    %186 = vector.shape_cast %185 : vector<16x32xf32> to vector<2x8x32xf32>
    %c0_51 = arith.constant 0 : index
    %c0_52 = arith.constant 0 : index
    %c0_53 = arith.constant 0 : index
    %187 = vector.load %arg4[%c0_51, %c0_52, %c0_53] : memref<2x8x32xf32, #tpu.memory_space<vmem>>, vector<2x8x32xf32>
    tpu.vector_store %arg4[%c0_51, %c0_52, %c0_53], %186 {strides = array<i32>} : memref<2x8x32xf32, #tpu.memory_space<vmem>>, vector<2x8x32xf32>,
    return
  }
}

</mosaic_0001>

<llo_original>
// kernel: tpu_custom_call.1
$region0: #{tpu_custom_call.1}
  #allocation0 [shape = 'u32[]', space=smem, size = 0x4, offset = 0x4, fixed_abs, tag = 'smem constant byte address 0x4 - core index']
  #allocation1 [shape = 'u32[144,128]{1,0:T(1,128)}', space=vmem, size = 0x12000, scoped, tag = 'internal scratch']
  %s0 = inlined_call_operand.hbm [shape: f32[2,8,32], index: 0, kind: input, shape index: {}]
  %s1 = inlined_call_operand.hbm [shape: s32[2,8,8], index: 1, kind: input, shape index: {}]
  %s2 = inlined_call_operand.hbm [shape: bf16[256,128], index: 2, kind: input, shape index: {}]
  %s3 = inlined_call_operand.hbm [shape: f32[16,128], index: 3, kind: input, shape index: {}]
  %s4 = inlined_call_operand.hbm [shape: f32[2,8,32], index: 4, kind: output, shape index: {0}]
  %s5 = inlined_call_operand.hbm [shape: f32[2,4,8,8], index: 5, kind: output, shape index: {1}]
  %6 = xla_tuple %s4, %s5
  %s7 = sld [smem:[#allocation0]]
  $region50: #{tpu_custom_call.1} parent=0
    _
  %s9 = ssub.s32 1, %s7
  %s10 = scalar_select 0, %s9, %s7
  $region1: #{tpu_custom_call.1} parent=0
    #allocation2 [shape = 'u8[8192]{0}', space=vmem, size = 0x2000, scoped, tag = 'input window, operand 0, single buffered']
    #allocation3 [shape = 's32[1]{0}', space=sflag, size = 0x4, scoped, tag = 'scoped memory for tpu_custom_call.1']
    #allocation4 [shape = 's32[1]{0}', space=sflag, size = 0x4, scoped, tag = 'scoped memory for tpu_custom_call.1']
    #allocation5 [shape = 'u8[8192]{0}', space=vmem, size = 0x2000, scoped, tag = 'input window, operand 1, single buffered']
    #allocation6 [shape = 's32[1]{0}', space=sflag, size = 0x4, scoped, tag = 'scoped memory for tpu_custom_call.1']
    #allocation7 [shape = 'u8[65536]{0}', space=vmem, size = 0x10000, scoped, tag = 'input window, operand 2, single buffered']
    #allocation8 [shape = 'u8[8192]{0}', space=vmem, size = 0x2000, scoped, tag = 'input window, operand 3, single buffered']
    #allocation9 [shape = 's32[1]{0}', space=sflag, size = 0x4, scoped, tag = 'scoped memory for tpu_custom_call.1']
    #allocation10 [shape = 'u8[8192]{0}', space=vmem, size = 0x2000, scoped, tag = 'output window, operand 0, single buffered']
    #allocation11 [shape = 'u8[32768]{0}', space=vmem, size = 0x8000, scoped, tag = 'output window, operand 1, single buffered']
    #allocation12 [shape = 's32[1]{0}', space=sflag, size = 0x4, scoped, tag = 'scoped memory for tpu_custom_call.1']
    %11 = vsyncpa [#allocation3], 0
    %12 = vsyncpa [#allocation6], 0
    %13 = vsyncpa [#allocation9], 0
    %14 = vsyncpa [#allocation4], 0
    %15 = vsyncpa [#allocation12], 0
    // Predicated region
    $region2: #{tpu_custom_call.1} parent=1 // pred_check
      _
    $region3: #{tpu_custom_call.1} parent=1 // pred_check_branch
      %17 = sbr.rel (0) target = $region5
    $region4: #{tpu_custom_call.1} parent=1 // pred_region
      %s19 = ssub.s32 256, 256
      %20 = vsyncadd [#allocation3], %s19
      %s21 = sshll.u32 [#allocation2], 4
      %s22 = int_to_ptr.vmem [resolvable:$true] %s21
      %27 = dma.hbm_to_vmem [thread:$0]  %s0, 256, %s22, [#allocation3], 128, 128, 8
    $region5: #{tpu_custom_call.1} parent=1 // pred_fallthru
      _
    // Predicated region
    $region6: #{tpu_custom_call.1} parent=1 // pred_check
      _
    $region7: #{tpu_custom_call.1} parent=1 // pred_check_branch
      %29 = sbr.rel (0) target = $region9
    $region8: #{tpu_custom_call.1} parent=1 // pred_region
      %s31 = ssub.s32 256, 256
      %32 = vsyncadd [#allocation6], %s31
      %s33 = sshll.u32 [#allocation5], 4
      %s34 = int_to_ptr.vmem [resolvable:$true] %s33
      %39 = dma.hbm_to_vmem [thread:$0]  %s1, 256, %s34, [#allocation6], 128, 128, 8
    $region9: #{tpu_custom_call.1} parent=1 // pred_fallthru
      _
    // Predicated region
    $region10: #{tpu_custom_call.1} parent=1 // pred_check
      _
    $region11: #{tpu_custom_call.1} parent=1 // pred_check_branch
      %41 = sbr.rel (0) target = $region13
    $region12: #{tpu_custom_call.1} parent=1 // pred_region
      %s43 = ssub.s32 2048, 2048
      %44 = vsyncadd [#allocation6], %s43
      %s45 = sshll.u32 [#allocation7], 4
      %s46 = int_to_ptr.vmem [resolvable:$true] %s45
      %51 = dma.hbm_to_vmem [thread:$0]  %s2, 2048, %s46, [#allocation6], 64, 64, 4
    $region13: #{tpu_custom_call.1} parent=1 // pred_fallthru
      _
    // Predicated region
    $region14: #{tpu_custom_call.1} parent=1 // pred_check
      _
    $region15: #{tpu_custom_call.1} parent=1 // pred_check_branch
      %53 = sbr.rel (0) target = $region17
    $region16: #{tpu_custom_call.1} parent=1 // pred_region
      %s55 = ssub.s32 256, 256
      %56 = vsyncadd [#allocation9], %s55
      %s57 = sshll.u32 [#allocation8], 4
      %s58 = int_to_ptr.vmem [resolvable:$true] %s57
      %63 = dma.hbm_to_vmem [thread:$0]  %s3, 256, %s58, [#allocation9], 128, 128, 8
    $region17: #{tpu_custom_call.1} parent=1 // pred_fallthru
      _
    // Predicated region
    $region18: #{tpu_custom_call.1} parent=1 // pred_check
      _
    $region19: #{tpu_custom_call.1} parent=1 // pred_check_branch
      %65 = sbr.rel (0) target = $region21
    $region20: #{tpu_custom_call.1} parent=1 // pred_region
      %66 = dma.done [#allocation3], 256
    $region21: #{tpu_custom_call.1} parent=1 // pred_fallthru
      _
    // Predicated region
    $region22: #{tpu_custom_call.1} parent=1 // pred_check
      _
    $region23: #{tpu_custom_call.1} parent=1 // pred_check_branch
      %68 = sbr.rel (0) target = $region25
    $region24: #{tpu_custom_call.1} parent=1 // pred_region
      %69 = dma.done [#allocation6], 256
    $region25: #{tpu_custom_call.1} parent=1 // pred_fallthru
      _
    // Predicated region
    $region26: #{tpu_custom_call.1} parent=1 // pred_check
      _
    $region27: #{tpu_custom_call.1} parent=1 // pred_check_branch
      %71 = sbr.rel (0) target = $region29
    $region28: #{tpu_custom_call.1} parent=1 // pred_region
      %72 = dma.done [#allocation6], 2048
    $region29: #{tpu_custom_call.1} parent=1 // pred_fallthru
      _
    // Predicated region
    $region30: #{tpu_custom_call.1} parent=1 // pred_check
      _
    $region31: #{tpu_custom_call.1} parent=1 // pred_check_branch
      %74 = sbr.rel (0) target = $region33
    $region32: #{tpu_custom_call.1} parent=1 // pred_region
      %75 = dma.done [#allocation9], 256
    $region33: #{tpu_custom_call.1} parent=1 // pred_fallthru
      _
    %v77 = vld [vmem:[#allocation7] sm:$0xf]
    %v78 = vld [vmem:[#allocation7 + $0x4] sm:$0xf]
    %v79 = vld [vmem:[#allocation7 + $0x8] sm:$0xf]
    %v80 = vld [vmem:[#allocation7 + $0xc] sm:$0xf]
    %v81 = vld [vmem:[#allocation7 + $0x10] sm:$0xf]
    %v82 = vld [vmem:[#allocation7 + $0x14] sm:$0xf]
    %v83 = vld [vmem:[#allocation7 + $0x18] sm:$0xf]
    %v84 = vld [vmem:[#allocation7 + $0x1c] sm:$0xf]
    %v85 = vld [vmem:[#allocation7 + $0x20] sm:$0xf]
    %v86 = vld [vmem:[#allocation7 + $0x24] sm:$0xf]
    %v87 = vld [vmem:[#allocation7 + $0x28] sm:$0xf]
    %v88 = vld [vmem:[#allocation7 + $0x2c] sm:$0xf]
    %v89 = vld [vmem:[#allocation7 + $0x30] sm:$0xf]
    %v90 = vld [vmem:[#allocation7 + $0x34] sm:$0xf]
    %v91 = vld [vmem:[#allocation7 + $0x38] sm:$0xf]
    %v92 = vld [vmem:[#allocation7 + $0x3c] sm:$0xf]
    %v93 = vld [vmem:[#allocation7 + $0x40] sm:$0xf]
    %v94 = vld [vmem:[#allocation7 + $0x44] sm:$0xf]
    %v95 = vld [vmem:[#allocation7 + $0x48] sm:$0xf]
    %v96 = vld [vmem:[#allocation7 + $0x4c] sm:$0xf]
    %v97 = vld [vmem:[#allocation7 + $0x50] sm:$0xf]
    %v98 = vld [vmem:[#allocation7 + $0x54] sm:$0xf]
    %v99 = vld [vmem:[#allocation7 + $0x58] sm:$0xf]
    %v100 = vld [vmem:[#allocation7 + $0x5c] sm:$0xf]
    %v101 = vld [vmem:[#allocation7 + $0x60] sm:$0xf]
    %v102 = vld [vmem:[#allocation7 + $0x64] sm:$0xf]
    %v103 = vld [vmem:[#allocation7 + $0x68] sm:$0xf]
    %v104 = vld [vmem:[#allocation7 + $0x6c] sm:$0xf]
    %v105 = vld [vmem:[#allocation7 + $0x70] sm:$0xf]
    %v106 = vld [vmem:[#allocation7 + $0x74] sm:$0xf]
    %v107 = vld [vmem:[#allocation7 + $0x78] sm:$0xf]
    %v108 = vld [vmem:[#allocation7 + $0x7c] sm:$0xf]
    %v109 = vld [vmem:[#allocation8] sm:$0x1]
    %v110 = vld [vmem:[#allocation8 + $0x1] sm:$0x1]
    %v111 = vld [vmem:[#allocation8 + $0x2] sm:$0x1]
    %v112 = vld [vmem:[#allocation8 + $0x3] sm:$0x1]
    %v113 = vld [vmem:[#allocation8 + $0x4] sm:$0x1]
    %v114 = vld [vmem:[#allocation8 + $0x5] sm:$0x1]
    %v115 = vld [vmem:[#allocation8 + $0x6] sm:$0x1]
    %v116 = vld [vmem:[#allocation8 + $0x7] sm:$0x1]
    %v117 = vld [vmem:[#allocation8 + $0x8] sm:$0x1]
    %v118 = vld [vmem:[#allocation8 + $0x9] sm:$0x1]
    %v119 = vld [vmem:[#allocation8 + $0xa] sm:$0x1]
    %v120 = vld [vmem:[#allocation2] sm:$0xff]
    %v121 = vld [vmem:[#allocation2 + $0x8] sm:$0xff]
    %v122 = vpack.c.bf16 %v121, %v120
    %v123 = vlaneseq
    %v124 = vshrl.u32 %v123, 7
    %v125 = vsub.s32 0, %v124
    %v126 = vrot.slane %v109, %v125
    %v131 = vunpack.c.l.b16 %v77
    %v132 = vunpack.c.l.b16 %v78
    %v133 = vunpack.c.l.b16 %v79
    %v134 = vunpack.c.l.b16 %v80
    %v135 = vpack.c.b16 %v132, %v131
    %v136 = vpack.c.b16 %v134, %v133
    %vm139 = vcmask 261120
    %v141 = vsel %vm139, %v122, 0
    %143 = vmatprep.subr.bf16.mxu0 0
    %144 = vmatpush1.bf16.msra.mxu0 0
    %145 = vmatprep.subr.bf16.mxu0 0
    %146 = vmatpush1.bf16.msra.mxu0 0
    %147 = vmatprep.subr.bf16.mxu0 0
    %148 = vmatpush1.bf16.msra.mxu0 0
    %149 = vmatprep.subr.bf16.mxu0 0
    %150 = vmatpush1.bf16.msra.mxu0 0
    %151 = vmatprep.subr.bf16.mxu0 0
    %152 = vmatpush1.bf16.msra.mxu0 0
    %153 = vmatprep.subr.bf16.mxu0 0
    %154 = vmatpush1.bf16.msra.mxu0 0
    %155 = vmatprep.subr.bf16.mxu0 0
    %156 = vmatpush1.bf16.msra.mxu0 %v136
    %157 = vmatprep.subr.bf16.mxu0 0
    %158 = vmatpush1.bf16.msra.mxu0 %v135
    %159 = vmatprep.subr.bf16.mxu0 0
    %160 = vmatpush2.bf16.msra.mxu0 0
    %161 = vmatprep.subr.bf16.mxu0 0
    %162 = vmatpush2.bf16.msra.mxu0 0
    %163 = vmatprep.subr.bf16.mxu0 0
    %164 = vmatpush2.bf16.msra.mxu0 0
    %165 = vmatprep.subr.bf16.mxu0 0
    %166 = vmatpush2.bf16.msra.mxu0 0
    %167 = vmatprep.subr.bf16.mxu0 0
    %168 = vmatpush2.bf16.msra.mxu0 0
    %169 = vmatprep.subr.bf16.mxu0 0
    %170 = vmatpush2.bf16.msra.mxu0 0
    %171 = vmatprep.subr.bf16.mxu0 0
    %172 = vmatpush2.bf16.msra.mxu0 0
    %173 = vmatprep.subr.bf16.mxu0 0
    %174 = vmatpush2.bf16.msra.mxu0 0
    %175 = vmatprep.mubr.bf16.mxu0 0
    %176 = vmatmul.mubr.bf16.gmra.mxu0 %v141
    %v177 = vpop.f32.mrf.mxu0
    %v178 = vadd.f32 %v126, %v177
    %v179 = vpop.f32.mrf.mxu0
    %v180 = vpop.f32.mrf.mxu0
    %v181 = vadd.f32 %v126, %v180
    %v182 = vpop.f32.mrf.mxu0
    %183 = vdwg.mxu0
    %v184 = vtanh.pop %v178
    %v185 = vtanh.pop %v181
    %v186 = vpack.c.bf16 %v185, %v184
    %v187 = vlaneseq
    %v188 = vshrl.u32 %v187, 7
    %v189 = vsub.s32 0, %v188
    %v190 = vrot.slane %v110, %v189
    %v195 = vunpack.c.l.b16 %v81
    %v196 = vunpack.c.l.b16 %v82
    %v197 = vunpack.c.l.b16 %v83
    %v198 = vunpack.c.l.b16 %v84
    %v199 = vpack.c.b16 %v196, %v195
    %v200 = vpack.c.b16 %v198, %v197
    %v204 = vsel %vm139, %v186, 0
    %206 = vmatprep.subr.bf16.mxu0 0
    %207 = vmatpush1.bf16.msra.mxu0 0
    %208 = vmatprep.subr.bf16.mxu0 0
    %209 = vmatpush1.bf16.msra.mxu0 0
    %210 = vmatprep.subr.bf16.mxu0 0
    %211 = vmatpush1.bf16.msra.mxu0 0
    %212 = vmatprep.subr.bf16.mxu0 0
    %213 = vmatpush1.bf16.msra.mxu0 0
    %214 = vmatprep.subr.bf16.mxu0 0
    %215 = vmatpush1.bf16.msra.mxu0 0
    %216 = vmatprep.subr.bf16.mxu0 0
    %217 = vmatpush1.bf16.msra.mxu0 0
    %218 = vmatprep.subr.bf16.mxu0 0
    %219 = vmatpush1.bf16.msra.mxu0 %v200
    %220 = vmatprep.subr.bf16.mxu0 0
    %221 = vmatpush1.bf16.msra.mxu0 %v199
    %222 = vmatprep.subr.bf16.mxu0 0
    %223 = vmatpush2.bf16.msra.mxu0 0
    %224 = vmatprep.subr.bf16.mxu0 0
    %225 = vmatpush2.bf16.msra.mxu0 0
    %226 = vmatprep.subr.bf16.mxu0 0
    %227 = vmatpush2.bf16.msra.mxu0 0
    %228 = vmatprep.subr.bf16.mxu0 0
    %229 = vmatpush2.bf16.msra.mxu0 0
    %230 = vmatprep.subr.bf16.mxu0 0
    %231 = vmatpush2.bf16.msra.mxu0 0
    %232 = vmatprep.subr.bf16.mxu0 0
    %233 = vmatpush2.bf16.msra.mxu0 0
    %234 = vmatprep.subr.bf16.mxu0 0
    %235 = vmatpush2.bf16.msra.mxu0 0
    %236 = vmatprep.subr.bf16.mxu0 0
    %237 = vmatpush2.bf16.msra.mxu0 0
    %238 = vmatprep.mubr.bf16.mxu0 0
    %239 = vmatmul.mubr.bf16.gmra.mxu0 %v204
    %v240 = vpop.f32.mrf.mxu0
    %v241 = vadd.f32 %v190, %v240
    %v242 = vpop.f32.mrf.mxu0
    %v243 = vpop.f32.mrf.mxu0
    %v244 = vadd.f32 %v190, %v243
    %v245 = vpop.f32.mrf.mxu0
    %246 = vdwg.mxu0
    %v247 = vtanh.pop %v241
    %v248 = vtanh.pop %v244
    %v249 = vpack.c.bf16 %v248, %v247
    %v250 = vlaneseq
    %v251 = vshrl.u32 %v250, 7
    %v252 = vsub.s32 0, %v251
    %v253 = vrot.slane %v111, %v252
    %v258 = vunpack.c.l.b16 %v85
    %v259 = vunpack.c.l.b16 %v86
    %v260 = vunpack.c.l.b16 %v87
    %v261 = vunpack.c.l.b16 %v88
    %v262 = vpack.c.b16 %v259, %v258
    %v263 = vpack.c.b16 %v261, %v260
    %v267 = vsel %vm139, %v249, 0
    %269 = vmatprep.subr.bf16.mxu0 0
    %270 = vmatpush1.bf16.msra.mxu0 0
    %271 = vmatprep.subr.bf16.mxu0 0
    %272 = vmatpush1.bf16.msra.mxu0 0
    %273 = vmatprep.subr.bf16.mxu0 0
    %274 = vmatpush1.bf16.msra.mxu0 0
    %275 = vmatprep.subr.bf16.mxu0 0
    %276 = vmatpush1.bf16.msra.mxu0 0
    %277 = vmatprep.subr.bf16.mxu0 0
    %278 = vmatpush1.bf16.msra.mxu0 0
    %279 = vmatprep.subr.bf16.mxu0 0
    %280 = vmatpush1.bf16.msra.mxu0 0
    %281 = vmatprep.subr.bf16.mxu0 0
    %282 = vmatpush1.bf16.msra.mxu0 %v263
    %283 = vmatprep.subr.bf16.mxu0 0
    %284 = vmatpush1.bf16.msra.mxu0 %v262
    %285 = vmatprep.subr.bf16.mxu0 0
    %286 = vmatpush2.bf16.msra.mxu0 0
    %287 = vmatprep.subr.bf16.mxu0 0
    %288 = vmatpush2.bf16.msra.mxu0 0
    %289 = vmatprep.subr.bf16.mxu0 0
    %290 = vmatpush2.bf16.msra.mxu0 0
    %291 = vmatprep.subr.bf16.mxu0 0
    %292 = vmatpush2.bf16.msra.mxu0 0
    %293 = vmatprep.subr.bf16.mxu0 0
    %294 = vmatpush2.bf16.msra.mxu0 0
    %295 = vmatprep.subr.bf16.mxu0 0
    %296 = vmatpush2.bf16.msra.mxu0 0
    %297 = vmatprep.subr.bf16.mxu0 0
    %298 = vmatpush2.bf16.msra.mxu0 0
    %299 = vmatprep.subr.bf16.mxu0 0
    %300 = vmatpush2.bf16.msra.mxu0 0
    %301 = vmatprep.mubr.bf16.mxu0 0
    %302 = vmatmul.mubr.bf16.gmra.mxu0 %v267
    %v303 = vpop.f32.mrf.mxu0
    %v304 = vadd.f32 %v253, %v303
    %v305 = vpop.f32.mrf.mxu0
    %v306 = vpop.f32.mrf.mxu0
    %v307 = vadd.f32 %v253, %v306
    %v308 = vpop.f32.mrf.mxu0
    %309 = vdwg.mxu0
    %v310 = vtanh.pop %v304
    %v311 = vtanh.pop %v307
    %v312 = vadd.f32 %v120, %v310
    %v313 = vadd.f32 %v121, %v311
    %v314 = vpack.c.bf16 %v313, %v312
    %v315 = vlaneseq
    %v316 = vshrl.u32 %v315, 7
    %v317 = vsub.s32 0, %v316
    %v318 = vrot.slane %v112, %v317
    %v323 = vunpack.c.l.b16 %v89
    %v324 = vunpack.c.l.b16 %v90
    %v325 = vunpack.c.l.b16 %v91
    %v326 = vunpack.c.l.b16 %v92
    %v327 = vpack.c.b16 %v324, %v323
    %v328 = vpack.c.b16 %v326, %v325
    %v332 = vsel %vm139, %v314, 0
    %334 = vmatprep.subr.bf16.mxu0 0
    %335 = vmatpush1.bf16.msra.mxu0 0
    %336 = vmatprep.subr.bf16.mxu0 0
    %337 = vmatpush1.bf16.msra.mxu0 0
    %338 = vmatprep.subr.bf16.mxu0 0
    %339 = vmatpush1.bf16.msra.mxu0 0
    %340 = vmatprep.subr.bf16.mxu0 0
    %341 = vmatpush1.bf16.msra.mxu0 0
    %342 = vmatprep.subr.bf16.mxu0 0
    %343 = vmatpush1.bf16.msra.mxu0 0
    %344 = vmatprep.subr.bf16.mxu0 0
    %345 = vmatpush1.bf16.msra.mxu0 0
    %346 = vmatprep.subr.bf16.mxu0 0
    %347 = vmatpush1.bf16.msra.mxu0 %v328
    %348 = vmatprep.subr.bf16.mxu0 0
    %349 = vmatpush1.bf16.msra.mxu0 %v327
    %350 = vmatprep.subr.bf16.mxu0 0
    %351 = vmatpush2.bf16.msra.mxu0 0
    %352 = vmatprep.subr.bf16.mxu0 0
    %353 = vmatpush2.bf16.msra.mxu0 0
    %354 = vmatprep.subr.bf16.mxu0 0
    %355 = vmatpush2.bf16.msra.mxu0 0
    %356 = vmatprep.subr.bf16.mxu0 0
    %357 = vmatpush2.bf16.msra.mxu0 0
    %358 = vmatprep.subr.bf16.mxu0 0
    %359 = vmatpush2.bf16.msra.mxu0 0
    %360 = vmatprep.subr.bf16.mxu0 0
    %361 = vmatpush2.bf16.msra.mxu0 0
    %362 = vmatprep.subr.bf16.mxu0 0
    %363 = vmatpush2.bf16.msra.mxu0 0
    %364 = vmatprep.subr.bf16.mxu0 0
    %365 = vmatpush2.bf16.msra.mxu0 0
    %366 = vmatprep.mubr.bf16.mxu0 0
    %367 = vmatmul.mubr.bf16.gmra.mxu0 %v332
    %v368 = vpop.f32.mrf.mxu0
    %v369 = vadd.f32 %v318, %v368
    %v370 = vpop.f32.mrf.mxu0
    %v371 = vpop.f32.mrf.mxu0
    %v372 = vadd.f32 %v318, %v371
    %v373 = vpop.f32.mrf.mxu0
    %374 = vdwg.mxu0
    %376 = vrot.lane.b32.xlu0 %v369, 120
    %v377 = vpop.permute.xlu0 %376
    %379 = vrot.lane.b32.xlu0 %v369, 112
    %v380 = vpop.permute.xlu0 %379
    %382 = vrot.lane.b32.xlu0 %v369, 104
    %v383 = vpop.permute.xlu0 %382
    %386 = vrot.lane.b32.xlu0 %v372, 120
    %v387 = vpop.permute.xlu0 %386
    %389 = vrot.lane.b32.xlu0 %v372, 112
    %v390 = vpop.permute.xlu0 %389
    %392 = vrot.lane.b32.xlu0 %v372, 104
    %v393 = vpop.permute.xlu0 %392
    %v395 = vpack.c.bf16 %v369, %v369
    %v396 = vpack.c.bf16 %v377, %v377
    %v397 = vpack.c.bf16 %v380, %v380
    %v398 = vpack.c.bf16 %v383, %v383
    %v399 = vpack.c.bf16 %v372, %v372
    %v400 = vpack.c.bf16 %v387, %v387
    %v401 = vpack.c.bf16 %v390, %v390
    %v402 = vpack.c.bf16 %v393, %v393
    %404 = vrot.lane.b32.xlu0 %v395, 96
    %v405 = vpop.permute.xlu0 %404
    %vm406 = vcmask 64512
    %v408 = vsel %vm406, %v395, 0
    %v411 = vsel %vm406, %v405, 0
    %413 = vmatprep.subr.bf16.mxu0 0
    %414 = vmatpush1.bf16.xpose.msra.mxu0 0
    %415 = vmatprep.subr.bf16.mxu0 0
    %416 = vmatpush1.bf16.xpose.msra.mxu0 0
    %417 = vmatprep.subr.bf16.mxu0 0
    %418 = vmatpush1.bf16.xpose.msra.mxu0 0
    %419 = vmatprep.subr.bf16.mxu0 0
    %420 = vmatpush1.bf16.xpose.msra.mxu0 0
    %421 = vmatprep.subr.bf16.mxu0 0
    %422 = vmatpush1.bf16.xpose.msra.mxu0 0
    %423 = vmatprep.subr.bf16.mxu0 0
    %424 = vmatpush1.bf16.xpose.msra.mxu0 0
    %425 = vmatprep.subr.bf16.mxu0 0
    %426 = vmatpush1.bf16.xpose.msra.mxu0 0
    %427 = vmatprep.subr.bf16.mxu0 0
    %428 = vmatpush1.bf16.xpose.msra.mxu0 %v411
    %429 = vmatprep.subr.bf16.mxu0 0
    %430 = vmatpush2.bf16.xpose.msra.mxu0 0
    %431 = vmatprep.subr.bf16.mxu0 0
    %432 = vmatpush2.bf16.xpose.msra.mxu0 0
    %433 = vmatprep.subr.bf16.mxu0 0
    %434 = vmatpush2.bf16.xpose.msra.mxu0 0
    %435 = vmatprep.subr.bf16.mxu0 0
    %436 = vmatpush2.bf16.xpose.msra.mxu0 0
    %437 = vmatprep.subr.bf16.mxu0 0
    %438 = vmatpush2.bf16.xpose.msra.mxu0 0
    %439 = vmatprep.subr.bf16.mxu0 0
    %440 = vmatpush2.bf16.xpose.msra.mxu0 0
    %441 = vmatprep.subr.bf16.mxu0 0
    %442 = vmatpush2.bf16.xpose.msra.mxu0 0
    %443 = vmatprep.subr.bf16.mxu0 0
    %444 = vmatpush2.bf16.xpose.msra.mxu0 0
    %445 = vmatprep.mubr.bf16.mxu0 0
    %446 = vmatmul.mubr.bf16.gmra.mxu0 %v408
    %v447 = vpop.f32.mrf.mxu0
    %v448 = vadd.f32 0.0, %v447
    %v449 = vpop.f32.mrf.mxu0
    %v450 = vpop.f32.mrf.mxu0
    %v451 = vpop.f32.mrf.mxu0
    %452 = vdwg.mxu0
    %454 = vrot.lane.b32.xlu0 %v396, 96
    %v455 = vpop.permute.xlu0 %454
    %v457 = vsel %vm406, %v396, 0
    %v460 = vsel %vm406, %v455, 0
    %462 = vmatprep.subr.bf16.mxu0 0
    %463 = vmatpush1.bf16.xpose.msra.mxu0 0
    %464 = vmatprep.subr.bf16.mxu0 0
    %465 = vmatpush1.bf16.xpose.msra.mxu0 0
    %466 = vmatprep.subr.bf16.mxu0 0
    %467 = vmatpush1.bf16.xpose.msra.mxu0 0
    %468 = vmatprep.subr.bf16.mxu0 0
    %469 = vmatpush1.bf16.xpose.msra.mxu0 0
    %470 = vmatprep.subr.bf16.mxu0 0
    %471 = vmatpush1.bf16.xpose.msra.mxu0 0
    %472 = vmatprep.subr.bf16.mxu0 0
    %473 = vmatpush1.bf16.xpose.msra.mxu0 0
    %474 = vmatprep.subr.bf16.mxu0 0
    %475 = vmatpush1.bf16.xpose.msra.mxu0 0
    %476 = vmatprep.subr.bf16.mxu0 0
    %477 = vmatpush1.bf16.xpose.msra.mxu0 %v460
    %478 = vmatprep.subr.bf16.mxu0 0
    %479 = vmatpush2.bf16.xpose.msra.mxu0 0
    %480 = vmatprep.subr.bf16.mxu0 0
    %481 = vmatpush2.bf16.xpose.msra.mxu0 0
    %482 = vmatprep.subr.bf16.mxu0 0
    %483 = vmatpush2.bf16.xpose.msra.mxu0 0
    %484 = vmatprep.subr.bf16.mxu0 0
    %485 = vmatpush2.bf16.xpose.msra.mxu0 0
    %486 = vmatprep.subr.bf16.mxu0 0
    %487 = vmatpush2.bf16.xpose.msra.mxu0 0
    %488 = vmatprep.subr.bf16.mxu0 0
    %489 = vmatpush2.bf16.xpose.msra.mxu0 0
    %490 = vmatprep.subr.bf16.mxu0 0
    %491 = vmatpush2.bf16.xpose.msra.mxu0 0
    %492 = vmatprep.subr.bf16.mxu0 0
    %493 = vmatpush2.bf16.xpose.msra.mxu0 0
    %494 = vmatprep.mubr.bf16.mxu0 0
    %495 = vmatmul.mubr.bf16.gmra.mxu0 %v457
    %v496 = vpop.f32.mrf.mxu0
    %v497 = vadd.f32 0.0, %v496
    %v498 = vpop.f32.mrf.mxu0
    %v499 = vpop.f32.mrf.mxu0
    %v500 = vpop.f32.mrf.mxu0
    %501 = vdwg.mxu0
    %503 = vrot.lane.b32.xlu0 %v397, 96
    %v504 = vpop.permute.xlu0 %503
    %v506 = vsel %vm406, %v397, 0
    %v509 = vsel %vm406, %v504, 0
    %511 = vmatprep.subr.bf16.mxu0 0
    %512 = vmatpush1.bf16.xpose.msra.mxu0 0
    %513 = vmatprep.subr.bf16.mxu0 0
    %514 = vmatpush1.bf16.xpose.msra.mxu0 0
    %515 = vmatprep.subr.bf16.mxu0 0
    %516 = vmatpush1.bf16.xpose.msra.mxu0 0
    %517 = vmatprep.subr.bf16.mxu0 0
    %518 = vmatpush1.bf16.xpose.msra.mxu0 0
    %519 = vmatprep.subr.bf16.mxu0 0
    %520 = vmatpush1.bf16.xpose.msra.mxu0 0
    %521 = vmatprep.subr.bf16.mxu0 0
    %522 = vmatpush1.bf16.xpose.msra.mxu0 0
    %523 = vmatprep.subr.bf16.mxu0 0
    %524 = vmatpush1.bf16.xpose.msra.mxu0 0
    %525 = vmatprep.subr.bf16.mxu0 0
    %526 = vmatpush1.bf16.xpose.msra.mxu0 %v509
    %527 = vmatprep.subr.bf16.mxu0 0
    %528 = vmatpush2.bf16.xpose.msra.mxu0 0
    %529 = vmatprep.subr.bf16.mxu0 0
    %530 = vmatpush2.bf16.xpose.msra.mxu0 0
    %531 = vmatprep.subr.bf16.mxu0 0
    %532 = vmatpush2.bf16.xpose.msra.mxu0 0
    %533 = vmatprep.subr.bf16.mxu0 0
    %534 = vmatpush2.bf16.xpose.msra.mxu0 0
    %535 = vmatprep.subr.bf16.mxu0 0
    %536 = vmatpush2.bf16.xpose.msra.mxu0 0
    %537 = vmatprep.subr.bf16.mxu0 0
    %538 = vmatpush2.bf16.xpose.msra.mxu0 0
    %539 = vmatprep.subr.bf16.mxu0 0
    %540 = vmatpush2.bf16.xpose.msra.mxu0 0
    %541 = vmatprep.subr.bf16.mxu0 0
    %542 = vmatpush2.bf16.xpose.msra.mxu0 0
    %543 = vmatprep.mubr.bf16.mxu0 0
    %544 = vmatmul.mubr.bf16.gmra.mxu0 %v506
    %v545 = vpop.f32.mrf.mxu0
    %v546 = vadd.f32 0.0, %v545
    %v547 = vpop.f32.mrf.mxu0
    %v548 = vpop.f32.mrf.mxu0
    %v549 = vpop.f32.mrf.mxu0
    %550 = vdwg.mxu0
    %552 = vrot.lane.b32.xlu0 %v398, 96
    %v553 = vpop.permute.xlu0 %552
    %v555 = vsel %vm406, %v398, 0
    %v558 = vsel %vm406, %v553, 0
    %560 = vmatprep.subr.bf16.mxu0 0
    %561 = vmatpush1.bf16.xpose.msra.mxu0 0
    %562 = vmatprep.subr.bf16.mxu0 0
    %563 = vmatpush1.bf16.xpose.msra.mxu0 0
    %564 = vmatprep.subr.bf16.mxu0 0
    %565 = vmatpush1.bf16.xpose.msra.mxu0 0
    %566 = vmatprep.subr.bf16.mxu0 0
    %567 = vmatpush1.bf16.xpose.msra.mxu0 0
    %568 = vmatprep.subr.bf16.mxu0 0
    %569 = vmatpush1.bf16.xpose.msra.mxu0 0
    %570 = vmatprep.subr.bf16.mxu0 0
    %571 = vmatpush1.bf16.xpose.msra.mxu0 0
    %572 = vmatprep.subr.bf16.mxu0 0
    %573 = vmatpush1.bf16.xpose.msra.mxu0 0
    %574 = vmatprep.subr.bf16.mxu0 0
    %575 = vmatpush1.bf16.xpose.msra.mxu0 %v558
    %576 = vmatprep.subr.bf16.mxu0 0
    %577 = vmatpush2.bf16.xpose.msra.mxu0 0
    %578 = vmatprep.subr.bf16.mxu0 0
    %579 = vmatpush2.bf16.xpose.msra.mxu0 0
    %580 = vmatprep.subr.bf16.mxu0 0
    %581 = vmatpush2.bf16.xpose.msra.mxu0 0
    %582 = vmatprep.subr.bf16.mxu0 0
    %583 = vmatpush2.bf16.xpose.msra.mxu0 0
    %584 = vmatprep.subr.bf16.mxu0 0
    %585 = vmatpush2.bf16.xpose.msra.mxu0 0
    %586 = vmatprep.subr.bf16.mxu0 0
    %587 = vmatpush2.bf16.xpose.msra.mxu0 0
    %588 = vmatprep.subr.bf16.mxu0 0
    %589 = vmatpush2.bf16.xpose.msra.mxu0 0
    %590 = vmatprep.subr.bf16.mxu0 0
    %591 = vmatpush2.bf16.xpose.msra.mxu0 0
    %592 = vmatprep.mubr.bf16.mxu0 0
    %593 = vmatmul.mubr.bf16.gmra.mxu0 %v555
    %v594 = vpop.f32.mrf.mxu0
    %v595 = vadd.f32 0.0, %v594
    %v596 = vpop.f32.mrf.mxu0
    %v597 = vpop.f32.mrf.mxu0
    %v598 = vpop.f32.mrf.mxu0
    %599 = vdwg.mxu0
    %601 = vrot.lane.b32.xlu0 %v399, 96
    %v602 = vpop.permute.xlu0 %601
    %v604 = vsel %vm406, %v399, 0
    %v607 = vsel %vm406, %v602, 0
    %609 = vmatprep.subr.bf16.mxu0 0
    %610 = vmatpush1.bf16.xpose.msra.mxu0 0
    %611 = vmatprep.subr.bf16.mxu0 0
    %612 = vmatpush1.bf16.xpose.msra.mxu0 0
    %613 = vmatprep.subr.bf16.mxu0 0
    %614 = vmatpush1.bf16.xpose.msra.mxu0 0
    %615 = vmatprep.subr.bf16.mxu0 0
    %616 = vmatpush1.bf16.xpose.msra.mxu0 0
    %617 = vmatprep.subr.bf16.mxu0 0
    %618 = vmatpush1.bf16.xpose.msra.mxu0 0
    %619 = vmatprep.subr.bf16.mxu0 0
    %620 = vmatpush1.bf16.xpose.msra.mxu0 0
    %621 = vmatprep.subr.bf16.mxu0 0
    %622 = vmatpush1.bf16.xpose.msra.mxu0 0
    %623 = vmatprep.subr.bf16.mxu0 0
    %624 = vmatpush1.bf16.xpose.msra.mxu0 %v607
    %625 = vmatprep.subr.bf16.mxu0 0
    %626 = vmatpush2.bf16.xpose.msra.mxu0 0
    %627 = vmatprep.subr.bf16.mxu0 0
    %628 = vmatpush2.bf16.xpose.msra.mxu0 0
    %629 = vmatprep.subr.bf16.mxu0 0
    %630 = vmatpush2.bf16.xpose.msra.mxu0 0
    %631 = vmatprep.subr.bf16.mxu0 0
    %632 = vmatpush2.bf16.xpose.msra.mxu0 0
    %633 = vmatprep.subr.bf16.mxu0 0
    %634 = vmatpush2.bf16.xpose.msra.mxu0 0
    %635 = vmatprep.subr.bf16.mxu0 0
    %636 = vmatpush2.bf16.xpose.msra.mxu0 0
    %637 = vmatprep.subr.bf16.mxu0 0
    %638 = vmatpush2.bf16.xpose.msra.mxu0 0
    %639 = vmatprep.subr.bf16.mxu0 0
    %640 = vmatpush2.bf16.xpose.msra.mxu0 0
    %641 = vmatprep.mubr.bf16.mxu0 0
    %642 = vmatmul.mubr.bf16.gmra.mxu0 %v604
    %v643 = vpop.f32.mrf.mxu0
    %v644 = vadd.f32 0.0, %v643
    %v645 = vpop.f32.mrf.mxu0
    %v646 = vpop.f32.mrf.mxu0
    %v647 = vpop.f32.mrf.mxu0
    %648 = vdwg.mxu0
    %650 = vrot.lane.b32.xlu0 %v400, 96
    %v651 = vpop.permute.xlu0 %650
    %v653 = vsel %vm406, %v400, 0
    %v656 = vsel %vm406, %v651, 0
    %658 = vmatprep.subr.bf16.mxu0 0
    %659 = vmatpush1.bf16.xpose.msra.mxu0 0
    %660 = vmatprep.subr.bf16.mxu0 0
    %661 = vmatpush1.bf16.xpose.msra.mxu0 0
    %662 = vmatprep.subr.bf16.mxu0 0
    %663 = vmatpush1.bf16.xpose.msra.mxu0 0
    %664 = vmatprep.subr.bf16.mxu0 0
    %665 = vmatpush1.bf16.xpose.msra.mxu0 0
    %666 = vmatprep.subr.bf16.mxu0 0
    %667 = vmatpush1.bf16.xpose.msra.mxu0 0
    %668 = vmatprep.subr.bf16.mxu0 0
    %669 = vmatpush1.bf16.xpose.msra.mxu0 0
    %670 = vmatprep.subr.bf16.mxu0 0
    %671 = vmatpush1.bf16.xpose.msra.mxu0 0
    %672 = vmatprep.subr.bf16.mxu0 0
    %673 = vmatpush1.bf16.xpose.msra.mxu0 %v656
    %674 = vmatprep.subr.bf16.mxu0 0
    %675 = vmatpush2.bf16.xpose.msra.mxu0 0
    %676 = vmatprep.subr.bf16.mxu0 0
    %677 = vmatpush2.bf16.xpose.msra.mxu0 0
    %678 = vmatprep.subr.bf16.mxu0 0
    %679 = vmatpush2.bf16.xpose.msra.mxu0 0
    %680 = vmatprep.subr.bf16.mxu0 0
    %681 = vmatpush2.bf16.xpose.msra.mxu0 0
    %682 = vmatprep.subr.bf16.mxu0 0
    %683 = vmatpush2.bf16.xpose.msra.mxu0 0
    %684 = vmatprep.subr.bf16.mxu0 0
    %685 = vmatpush2.bf16.xpose.msra.mxu0 0
    %686 = vmatprep.subr.bf16.mxu0 0
    %687 = vmatpush2.bf16.xpose.msra.mxu0 0
    %688 = vmatprep.subr.bf16.mxu0 0
    %689 = vmatpush2.bf16.xpose.msra.mxu0 0
    %690 = vmatprep.mubr.bf16.mxu0 0
    %691 = vmatmul.mubr.bf16.gmra.mxu0 %v653
    %v692 = vpop.f32.mrf.mxu0
    %v693 = vadd.f32 0.0, %v692
    %v694 = vpop.f32.mrf.mxu0
    %v695 = vpop.f32.mrf.mxu0
    %v696 = vpop.f32.mrf.mxu0
    %697 = vdwg.mxu0
    %699 = vrot.lane.b32.xlu0 %v401, 96
    %v700 = vpop.permute.xlu0 %699
    %v702 = vsel %vm406, %v401, 0
    %v705 = vsel %vm406, %v700, 0
    %707 = vmatprep.subr.bf16.mxu0 0
    %708 = vmatpush1.bf16.xpose.msra.mxu0 0
    %709 = vmatprep.subr.bf16.mxu0 0
    %710 = vmatpush1.bf16.xpose.msra.mxu0 0
    %711 = vmatprep.subr.bf16.mxu0 0
    %712 = vmatpush1.bf16.xpose.msra.mxu0 0
    %713 = vmatprep.subr.bf16.mxu0 0
    %714 = vmatpush1.bf16.xpose.msra.mxu0 0
    %715 = vmatprep.subr.bf16.mxu0 0
    %716 = vmatpush1.bf16.xpose.msra.mxu0 0
    %717 = vmatprep.subr.bf16.mxu0 0
    %718 = vmatpush1.bf16.xpose.msra.mxu0 0
    %719 = vmatprep.subr.bf16.mxu0 0
    %720 = vmatpush1.bf16.xpose.msra.mxu0 0
    %721 = vmatprep.subr.bf16.mxu0 0
    %722 = vmatpush1.bf16.xpose.msra.mxu0 %v705
    %723 = vmatprep.subr.bf16.mxu0 0
    %724 = vmatpush2.bf16.xpose.msra.mxu0 0
    %725 = vmatprep.subr.bf16.mxu0 0
    %726 = vmatpush2.bf16.xpose.msra.mxu0 0
    %727 = vmatprep.subr.bf16.mxu0 0
    %728 = vmatpush2.bf16.xpose.msra.mxu0 0
    %729 = vmatprep.subr.bf16.mxu0 0
    %730 = vmatpush2.bf16.xpose.msra.mxu0 0
    %731 = vmatprep.subr.bf16.mxu0 0
    %732 = vmatpush2.bf16.xpose.msra.mxu0 0
    %733 = vmatprep.subr.bf16.mxu0 0
    %734 = vmatpush2.bf16.xpose.msra.mxu0 0
    %735 = vmatprep.subr.bf16.mxu0 0
    %736 = vmatpush2.bf16.xpose.msra.mxu0 0
    %737 = vmatprep.subr.bf16.mxu0 0
    %738 = vmatpush2.bf16.xpose.msra.mxu0 0
    %739 = vmatprep.mubr.bf16.mxu0 0
    %740 = vmatmul.mubr.bf16.gmra.mxu0 %v702
    %v741 = vpop.f32.mrf.mxu0
    %v742 = vadd.f32 0.0, %v741
    %v743 = vpop.f32.mrf.mxu0
    %v744 = vpop.f32.mrf.mxu0
    %v745 = vpop.f32.mrf.mxu0
    %746 = vdwg.mxu0
    %748 = vrot.lane.b32.xlu0 %v402, 96
    %v749 = vpop.permute.xlu0 %748
    %v751 = vsel %vm406, %v402, 0
    %v754 = vsel %vm406, %v749, 0
    %756 = vmatprep.subr.bf16.mxu0 0
    %757 = vmatpush1.bf16.xpose.msra.mxu0 0
    %758 = vmatprep.subr.bf16.mxu0 0
    %759 = vmatpush1.bf16.xpose.msra.mxu0 0
    %760 = vmatprep.subr.bf16.mxu0 0
    %761 = vmatpush1.bf16.xpose.msra.mxu0 0
    %762 = vmatprep.subr.bf16.mxu0 0
    %763 = vmatpush1.bf16.xpose.msra.mxu0 0
    %764 = vmatprep.subr.bf16.mxu0 0
    %765 = vmatpush1.bf16.xpose.msra.mxu0 0
    %766 = vmatprep.subr.bf16.mxu0 0
    %767 = vmatpush1.bf16.xpose.msra.mxu0 0
    %768 = vmatprep.subr.bf16.mxu0 0
    %769 = vmatpush1.bf16.xpose.msra.mxu0 0
    %770 = vmatprep.subr.bf16.mxu0 0
    %771 = vmatpush1.bf16.xpose.msra.mxu0 %v754
    %772 = vmatprep.subr.bf16.mxu0 0
    %773 = vmatpush2.bf16.xpose.msra.mxu0 0
    %774 = vmatprep.subr.bf16.mxu0 0
    %775 = vmatpush2.bf16.xpose.msra.mxu0 0
    %776 = vmatprep.subr.bf16.mxu0 0
    %777 = vmatpush2.bf16.xpose.msra.mxu0 0
    %778 = vmatprep.subr.bf16.mxu0 0
    %779 = vmatpush2.bf16.xpose.msra.mxu0 0
    %780 = vmatprep.subr.bf16.mxu0 0
    %781 = vmatpush2.bf16.xpose.msra.mxu0 0
    %782 = vmatprep.subr.bf16.mxu0 0
    %783 = vmatpush2.bf16.xpose.msra.mxu0 0
    %784 = vmatprep.subr.bf16.mxu0 0
    %785 = vmatpush2.bf16.xpose.msra.mxu0 0
    %786 = vmatprep.subr.bf16.mxu0 0
    %787 = vmatpush2.bf16.xpose.msra.mxu0 0
    %788 = vmatprep.mubr.bf16.mxu0 0
    %789 = vmatmul.mubr.bf16.gmra.mxu0 %v751
    %v790 = vpop.f32.mrf.mxu0
    %v791 = vadd.f32 0.0, %v790
    %v792 = vpop.f32.mrf.mxu0
    %v793 = vpop.f32.mrf.mxu0
    %v794 = vpop.f32.mrf.mxu0
    %795 = vdwg.mxu0
    %v796 = vld [vmem:[#allocation5] sm:$0xff]
    %v797 = vld [vmem:[#allocation5 + $0x8] sm:$0xff]
    %v798 = vcvt.s32.f32 %v796
    %v799 = vcvt.s32.f32 %v797
    %v800 = vmul.f32 %v798, -1e+18
    %v801 = vmul.f32 %v799, -1e+18
    %v802 = vadd.f32 %v448, %v800
    %v803 = vadd.f32 %v497, %v800
    %v804 = vadd.f32 %v546, %v800
    %v805 = vadd.f32 %v595, %v800
    %v806 = vadd.f32 %v644, %v801
    %v807 = vadd.f32 %v693, %v801
    %v808 = vadd.f32 %v742, %v801
    %v809 = vadd.f32 %v791, %v801
    %v810 = vsel %vm406, %v802, -inf
    %811 = vmax.xlane.f32.xlu0 %v810
    %v812 = vpop.xlane.xlu0 %811
    %v813 = vsel %vm406, %v803, -inf
    %814 = vmax.xlane.f32.xlu0 %v813
    %v815 = vpop.xlane.xlu0 %814
    %v816 = vsel %vm406, %v804, -inf
    %817 = vmax.xlane.f32.xlu0 %v816
    %v818 = vpop.xlane.xlu0 %817
    %v819 = vsel %vm406, %v805, -inf
    %820 = vmax.xlane.f32.xlu0 %v819
    %v821 = vpop.xlane.xlu0 %820
    %v822 = vsel %vm406, %v806, -inf
    %823 = vmax.xlane.f32.xlu0 %v822
    %v824 = vpop.xlane.xlu0 %823
    %v825 = vsel %vm406, %v807, -inf
    %826 = vmax.xlane.f32.xlu0 %v825
    %v827 = vpop.xlane.xlu0 %826
    %v828 = vsel %vm406, %v808, -inf
    %829 = vmax.xlane.f32.xlu0 %v828
    %v830 = vpop.xlane.xlu0 %829
    %v831 = vsel %vm406, %v809, -inf
    %832 = vmax.xlane.f32.xlu0 %v831
    %v833 = vpop.xlane.xlu0 %832
    %v834 = vsub.f32 %v802, %v812
    %v835 = vsub.f32 %v803, %v815
    %v836 = vsub.f32 %v804, %v818
    %v837 = vsub.f32 %v805, %v821
    %v838 = vsub.f32 %v806, %v824
    %v839 = vsub.f32 %v807, %v827
    %v840 = vsub.f32 %v808, %v830
    %v841 = vsub.f32 %v809, %v833
    %v842 = vmul.f32 %v834, 1.442695
    %v843 = vpow.pop %v842
    %v844 = vmul.f32 %v835, 1.442695
    %v845 = vpow.pop %v844
    %v846 = vmul.f32 %v836, 1.442695
    %v847 = vpow.pop %v846
    %v848 = vmul.f32 %v837, 1.442695
    %v849 = vpow.pop %v848
    %v850 = vmul.f32 %v838, 1.442695
    %v851 = vpow.pop %v850
    %v852 = vmul.f32 %v839, 1.442695
    %v853 = vpow.pop %v852
    %v854 = vmul.f32 %v840, 1.442695
    %v855 = vpow.pop %v854
    %v856 = vmul.f32 %v841, 1.442695
    %v857 = vpow.pop %v856
    %v858 = vsel %vm406, %v843, 0.0
    %859 = vadd.xlane.f32.xlu0 %v858
    %v860 = vpop.xlane.xlu0 %859
    %v861 = vsel %vm406, %v845, 0.0
    %862 = vadd.xlane.f32.xlu0 %v861
    %v863 = vpop.xlane.xlu0 %862
    %v864 = vsel %vm406, %v847, 0.0
    %865 = vadd.xlane.f32.xlu0 %v864
    %v866 = vpop.xlane.xlu0 %865
    %v867 = vsel %vm406, %v849, 0.0
    %868 = vadd.xlane.f32.xlu0 %v867
    %v869 = vpop.xlane.xlu0 %868
    %v870 = vsel %vm406, %v851, 0.0
    %871 = vadd.xlane.f32.xlu0 %v870
    %v872 = vpop.xlane.xlu0 %871
    %v873 = vsel %vm406, %v853, 0.0
    %874 = vadd.xlane.f32.xlu0 %v873
    %v875 = vpop.xlane.xlu0 %874
    %v876 = vsel %vm406, %v855, 0.0
    %877 = vadd.xlane.f32.xlu0 %v876
    %v878 = vpop.xlane.xlu0 %877
    %v879 = vsel %vm406, %v857, 0.0
    %880 = vadd.xlane.f32.xlu0 %v879
    %v881 = vpop.xlane.xlu0 %880
    %v882 = vrcp.pop %v860
    %v883 = vmul.f32 %v843, %v882
    %v884 = vrcp.pop %v863
    %v885 = vmul.f32 %v845, %v884
    %v886 = vrcp.pop %v866
    %v887 = vmul.f32 %v847, %v886
    %v888 = vrcp.pop %v869
    %v889 = vmul.f32 %v849, %v888
    %v890 = vrcp.pop %v872
    %v891 = vmul.f32 %v851, %v890
    %v892 = vrcp.pop %v875
    %v893 = vmul.f32 %v853, %v892
    %v894 = vrcp.pop %v878
    %v895 = vmul.f32 %v855, %v894
    %v896 = vrcp.pop %v881
    %v897 = vmul.f32 %v857, %v896
    %898 = vst.msk [vmem:[#allocation11] sm:$0xff] %vm406, %v883
    %899 = vst.msk [vmem:[#allocation11 + $0x8] sm:$0xff] %vm406, %v885
    %900 = vst.msk [vmem:[#allocation11 + $0x10] sm:$0xff] %vm406, %v887
    %901 = vst.msk [vmem:[#allocation11 + $0x18] sm:$0xff] %vm406, %v889
    %902 = vst.msk [vmem:[#allocation11 + $0x20] sm:$0xff] %vm406, %v891
    %903 = vst.msk [vmem:[#allocation11 + $0x28] sm:$0xff] %vm406, %v893
    %904 = vst.msk [vmem:[#allocation11 + $0x30] sm:$0xff] %vm406, %v895
    %905 = vst.msk [vmem:[#allocation11 + $0x38] sm:$0xff] %vm406, %v897
    %v906 = vpack.c.bf16 %v883, %v883
    %v907 = vpack.c.bf16 %v885, %v885
    %v908 = vpack.c.bf16 %v887, %v887
    %v909 = vpack.c.bf16 %v889, %v889
    %v910 = vpack.c.bf16 %v891, %v891
    %v911 = vpack.c.bf16 %v893, %v893
    %v912 = vpack.c.bf16 %v895, %v895
    %v913 = vpack.c.bf16 %v897, %v897
    %914 = vrot.lane.b32.xlu0 %v395, 64
    %v915 = vpop.permute.xlu0 %914
    %v917 = vsel %vm406, %v906, 0
    %vm919 = vcmask 1043456
    %v921 = vsel %vm919, %v915, 0
    %923 = vmatprep.subr.bf16.mxu0 0
    %924 = vmatpush1.bf16.msra.mxu0 0
    %925 = vmatprep.subr.bf16.mxu0 0
    %926 = vmatpush1.bf16.msra.mxu0 0
    %927 = vmatprep.subr.bf16.mxu0 0
    %928 = vmatpush1.bf16.msra.mxu0 0
    %929 = vmatprep.subr.bf16.mxu0 0
    %930 = vmatpush1.bf16.msra.mxu0 0
    %931 = vmatprep.subr.bf16.mxu0 0
    %932 = vmatpush1.bf16.msra.mxu0 0
    %933 = vmatprep.subr.bf16.mxu0 0
    %934 = vmatpush1.bf16.msra.mxu0 0
    %935 = vmatprep.subr.bf16.mxu0 0
    %936 = vmatpush1.bf16.msra.mxu0 0
    %937 = vmatprep.subr.bf16.mxu0 0
    %938 = vmatpush1.bf16.msra.mxu0 %v921
    %939 = vmatprep.subr.bf16.mxu0 0
    %940 = vmatpush2.bf16.msra.mxu0 0
    %941 = vmatprep.subr.bf16.mxu0 0
    %942 = vmatpush2.bf16.msra.mxu0 0
    %943 = vmatprep.subr.bf16.mxu0 0
    %944 = vmatpush2.bf16.msra.mxu0 0
    %945 = vmatprep.subr.bf16.mxu0 0
    %946 = vmatpush2.bf16.msra.mxu0 0
    %947 = vmatprep.subr.bf16.mxu0 0
    %948 = vmatpush2.bf16.msra.mxu0 0
    %949 = vmatprep.subr.bf16.mxu0 0
    %950 = vmatpush2.bf16.msra.mxu0 0
    %951 = vmatprep.subr.bf16.mxu0 0
    %952 = vmatpush2.bf16.msra.mxu0 0
    %953 = vmatprep.subr.bf16.mxu0 0
    %954 = vmatpush2.bf16.msra.mxu0 0
    %955 = vmatprep.mubr.bf16.mxu0 0
    %956 = vmatmul.mubr.bf16.gmra.mxu0 %v917
    %v957 = vpop.f32.mrf.mxu0
    %v958 = vadd.f32 0.0, %v957
    %v959 = vpop.f32.mrf.mxu0
    %v960 = vpop.f32.mrf.mxu0
    %v961 = vpop.f32.mrf.mxu0
    %962 = vdwg.mxu0
    %963 = vrot.lane.b32.xlu0 %v396, 64
    %v964 = vpop.permute.xlu0 %963
    %v966 = vsel %vm406, %v907, 0
    %v969 = vsel %vm919, %v964, 0
    %971 = vmatprep.subr.bf16.mxu0 0
    %972 = vmatpush1.bf16.msra.mxu0 0
    %973 = vmatprep.subr.bf16.mxu0 0
    %974 = vmatpush1.bf16.msra.mxu0 0
    %975 = vmatprep.subr.bf16.mxu0 0
    %976 = vmatpush1.bf16.msra.mxu0 0
    %977 = vmatprep.subr.bf16.mxu0 0
    %978 = vmatpush1.bf16.msra.mxu0 0
    %979 = vmatprep.subr.bf16.mxu0 0
    %980 = vmatpush1.bf16.msra.mxu0 0
    %981 = vmatprep.subr.bf16.mxu0 0
    %982 = vmatpush1.bf16.msra.mxu0 0
    %983 = vmatprep.subr.bf16.mxu0 0
    %984 = vmatpush1.bf16.msra.mxu0 0
    %985 = vmatprep.subr.bf16.mxu0 0
    %986 = vmatpush1.bf16.msra.mxu0 %v969
    %987 = vmatprep.subr.bf16.mxu0 0
    %988 = vmatpush2.bf16.msra.mxu0 0
    %989 = vmatprep.subr.bf16.mxu0 0
    %990 = vmatpush2.bf16.msra.mxu0 0
    %991 = vmatprep.subr.bf16.mxu0 0
    %992 = vmatpush2.bf16.msra.mxu0 0
    %993 = vmatprep.subr.bf16.mxu0 0
    %994 = vmatpush2.bf16.msra.mxu0 0
    %995 = vmatprep.subr.bf16.mxu0 0
    %996 = vmatpush2.bf16.msra.mxu0 0
    %997 = vmatprep.subr.bf16.mxu0 0
    %998 = vmatpush2.bf16.msra.mxu0 0
    %999 = vmatprep.subr.bf16.mxu0 0
    %1000 = vmatpush2.bf16.msra.mxu0 0
    %1001 = vmatprep.subr.bf16.mxu0 0
    %1002 = vmatpush2.bf16.msra.mxu0 0
    %1003 = vmatprep.mubr.bf16.mxu0 0
    %1004 = vmatmul.mubr.bf16.gmra.mxu0 %v966
    %v1005 = vpop.f32.mrf.mxu0
    %v1006 = vadd.f32 0.0, %v1005
    %v1007 = vpop.f32.mrf.mxu0
    %v1008 = vpop.f32.mrf.mxu0
    %v1009 = vpop.f32.mrf.mxu0
    %1010 = vdwg.mxu0
    %1011 = vrot.lane.b32.xlu0 %v397, 64
    %v1012 = vpop.permute.xlu0 %1011
    %v1014 = vsel %vm406, %v908, 0
    %v1017 = vsel %vm919, %v1012, 0
    %1019 = vmatprep.subr.bf16.mxu0 0
    %1020 = vmatpush1.bf16.msra.mxu0 0
    %1021 = vmatprep.subr.bf16.mxu0 0
    %1022 = vmatpush1.bf16.msra.mxu0 0
    %1023 = vmatprep.subr.bf16.mxu0 0
    %1024 = vmatpush1.bf16.msra.mxu0 0
    %1025 = vmatprep.subr.bf16.mxu0 0
    %1026 = vmatpush1.bf16.msra.mxu0 0
    %1027 = vmatprep.subr.bf16.mxu0 0
    %1028 = vmatpush1.bf16.msra.mxu0 0
    %1029 = vmatprep.subr.bf16.mxu0 0
    %1030 = vmatpush1.bf16.msra.mxu0 0
    %1031 = vmatprep.subr.bf16.mxu0 0
    %1032 = vmatpush1.bf16.msra.mxu0 0
    %1033 = vmatprep.subr.bf16.mxu0 0
    %1034 = vmatpush1.bf16.msra.mxu0 %v1017
    %1035 = vmatprep.subr.bf16.mxu0 0
    %1036 = vmatpush2.bf16.msra.mxu0 0
    %1037 = vmatprep.subr.bf16.mxu0 0
    %1038 = vmatpush2.bf16.msra.mxu0 0
    %1039 = vmatprep.subr.bf16.mxu0 0
    %1040 = vmatpush2.bf16.msra.mxu0 0
    %1041 = vmatprep.subr.bf16.mxu0 0
    %1042 = vmatpush2.bf16.msra.mxu0 0
    %1043 = vmatprep.subr.bf16.mxu0 0
    %1044 = vmatpush2.bf16.msra.mxu0 0
    %1045 = vmatprep.subr.bf16.mxu0 0
    %1046 = vmatpush2.bf16.msra.mxu0 0
    %1047 = vmatprep.subr.bf16.mxu0 0
    %1048 = vmatpush2.bf16.msra.mxu0 0
    %1049 = vmatprep.subr.bf16.mxu0 0
    %1050 = vmatpush2.bf16.msra.mxu0 0
    %1051 = vmatprep.mubr.bf16.mxu0 0
    %1052 = vmatmul.mubr.bf16.gmra.mxu0 %v1014
    %v1053 = vpop.f32.mrf.mxu0
    %v1054 = vadd.f32 0.0, %v1053
    %v1055 = vpop.f32.mrf.mxu0
    %v1056 = vpop.f32.mrf.mxu0
    %v1057 = vpop.f32.mrf.mxu0
    %1058 = vdwg.mxu0
    %1059 = vrot.lane.b32.xlu0 %v398, 64
    %v1060 = vpop.permute.xlu0 %1059
    %v1062 = vsel %vm406, %v909, 0
    %v1065 = vsel %vm919, %v1060, 0
    %1067 = vmatprep.subr.bf16.mxu0 0
    %1068 = vmatpush1.bf16.msra.mxu0 0
    %1069 = vmatprep.subr.bf16.mxu0 0
    %1070 = vmatpush1.bf16.msra.mxu0 0
    %1071 = vmatprep.subr.bf16.mxu0 0
    %1072 = vmatpush1.bf16.msra.mxu0 0
    %1073 = vmatprep.subr.bf16.mxu0 0
    %1074 = vmatpush1.bf16.msra.mxu0 0
    %1075 = vmatprep.subr.bf16.mxu0 0
    %1076 = vmatpush1.bf16.msra.mxu0 0
    %1077 = vmatprep.subr.bf16.mxu0 0
    %1078 = vmatpush1.bf16.msra.mxu0 0
    %1079 = vmatprep.subr.bf16.mxu0 0
    %1080 = vmatpush1.bf16.msra.mxu0 0
    %1081 = vmatprep.subr.bf16.mxu0 0
    %1082 = vmatpush1.bf16.msra.mxu0 %v1065
    %1083 = vmatprep.subr.bf16.mxu0 0
    %1084 = vmatpush2.bf16.msra.mxu0 0
    %1085 = vmatprep.subr.bf16.mxu0 0
    %1086 = vmatpush2.bf16.msra.mxu0 0
    %1087 = vmatprep.subr.bf16.mxu0 0
    %1088 = vmatpush2.bf16.msra.mxu0 0
    %1089 = vmatprep.subr.bf16.mxu0 0
    %1090 = vmatpush2.bf16.msra.mxu0 0
    %1091 = vmatprep.subr.bf16.mxu0 0
    %1092 = vmatpush2.bf16.msra.mxu0 0
    %1093 = vmatprep.subr.bf16.mxu0 0
    %1094 = vmatpush2.bf16.msra.mxu0 0
    %1095 = vmatprep.subr.bf16.mxu0 0
    %1096 = vmatpush2.bf16.msra.mxu0 0
    %1097 = vmatprep.subr.bf16.mxu0 0
    %1098 = vmatpush2.bf16.msra.mxu0 0
    %1099 = vmatprep.mubr.bf16.mxu0 0
    %1100 = vmatmul.mubr.bf16.gmra.mxu0 %v1062
    %v1101 = vpop.f32.mrf.mxu0
    %v1102 = vadd.f32 0.0, %v1101
    %v1103 = vpop.f32.mrf.mxu0
    %v1104 = vpop.f32.mrf.mxu0
    %v1105 = vpop.f32.mrf.mxu0
    %1106 = vdwg.mxu0
    %1107 = vrot.lane.b32.xlu0 %v399, 64
    %v1108 = vpop.permute.xlu0 %1107
    %v1110 = vsel %vm406, %v910, 0
    %v1113 = vsel %vm919, %v1108, 0
    %1115 = vmatprep.subr.bf16.mxu0 0
    %1116 = vmatpush1.bf16.msra.mxu0 0
    %1117 = vmatprep.subr.bf16.mxu0 0
    %1118 = vmatpush1.bf16.msra.mxu0 0
    %1119 = vmatprep.subr.bf16.mxu0 0
    %1120 = vmatpush1.bf16.msra.mxu0 0
    %1121 = vmatprep.subr.bf16.mxu0 0
    %1122 = vmatpush1.bf16.msra.mxu0 0
    %1123 = vmatprep.subr.bf16.mxu0 0
    %1124 = vmatpush1.bf16.msra.mxu0 0
    %1125 = vmatprep.subr.bf16.mxu0 0
    %1126 = vmatpush1.bf16.msra.mxu0 0
    %1127 = vmatprep.subr.bf16.mxu0 0
    %1128 = vmatpush1.bf16.msra.mxu0 0
    %1129 = vmatprep.subr.bf16.mxu0 0
    %1130 = vmatpush1.bf16.msra.mxu0 %v1113
    %1131 = vmatprep.subr.bf16.mxu0 0
    %1132 = vmatpush2.bf16.msra.mxu0 0
    %1133 = vmatprep.subr.bf16.mxu0 0
    %1134 = vmatpush2.bf16.msra.mxu0 0
    %1135 = vmatprep.subr.bf16.mxu0 0
    %1136 = vmatpush2.bf16.msra.mxu0 0
    %1137 = vmatprep.subr.bf16.mxu0 0
    %1138 = vmatpush2.bf16.msra.mxu0 0
    %1139 = vmatprep.subr.bf16.mxu0 0
    %1140 = vmatpush2.bf16.msra.mxu0 0
    %1141 = vmatprep.subr.bf16.mxu0 0
    %1142 = vmatpush2.bf16.msra.mxu0 0
    %1143 = vmatprep.subr.bf16.mxu0 0
    %1144 = vmatpush2.bf16.msra.mxu0 0
    %1145 = vmatprep.subr.bf16.mxu0 0
    %1146 = vmatpush2.bf16.msra.mxu0 0
    %1147 = vmatprep.mubr.bf16.mxu0 0
    %1148 = vmatmul.mubr.bf16.gmra.mxu0 %v1110
    %v1149 = vpop.f32.mrf.mxu0
    %v1150 = vadd.f32 0.0, %v1149
    %v1151 = vpop.f32.mrf.mxu0
    %v1152 = vpop.f32.mrf.mxu0
    %v1153 = vpop.f32.mrf.mxu0
    %1154 = vdwg.mxu0
    %1155 = vrot.lane.b32.xlu0 %v400, 64
    %v1156 = vpop.permute.xlu0 %1155
    %v1158 = vsel %vm406, %v911, 0
    %v1161 = vsel %vm919, %v1156, 0
    %1163 = vmatprep.subr.bf16.mxu0 0
    %1164 = vmatpush1.bf16.msra.mxu0 0
    %1165 = vmatprep.subr.bf16.mxu0 0
    %1166 = vmatpush1.bf16.msra.mxu0 0
    %1167 = vmatprep.subr.bf16.mxu0 0
    %1168 = vmatpush1.bf16.msra.mxu0 0
    %1169 = vmatprep.subr.bf16.mxu0 0
    %1170 = vmatpush1.bf16.msra.mxu0 0
    %1171 = vmatprep.subr.bf16.mxu0 0
    %1172 = vmatpush1.bf16.msra.mxu0 0
    %1173 = vmatprep.subr.bf16.mxu0 0
    %1174 = vmatpush1.bf16.msra.mxu0 0
    %1175 = vmatprep.subr.bf16.mxu0 0
    %1176 = vmatpush1.bf16.msra.mxu0 0
    %1177 = vmatprep.subr.bf16.mxu0 0
    %1178 = vmatpush1.bf16.msra.mxu0 %v1161
    %1179 = vmatprep.subr.bf16.mxu0 0
    %1180 = vmatpush2.bf16.msra.mxu0 0
    %1181 = vmatprep.subr.bf16.mxu0 0
    %1182 = vmatpush2.bf16.msra.mxu0 0
    %1183 = vmatprep.subr.bf16.mxu0 0
    %1184 = vmatpush2.bf16.msra.mxu0 0
    %1185 = vmatprep.subr.bf16.mxu0 0
    %1186 = vmatpush2.bf16.msra.mxu0 0
    %1187 = vmatprep.subr.bf16.mxu0 0
    %1188 = vmatpush2.bf16.msra.mxu0 0
    %1189 = vmatprep.subr.bf16.mxu0 0
    %1190 = vmatpush2.bf16.msra.mxu0 0
    %1191 = vmatprep.subr.bf16.mxu0 0
    %1192 = vmatpush2.bf16.msra.mxu0 0
    %1193 = vmatprep.subr.bf16.mxu0 0
    %1194 = vmatpush2.bf16.msra.mxu0 0
    %1195 = vmatprep.mubr.bf16.mxu0 0
    %1196 = vmatmul.mubr.bf16.gmra.mxu0 %v1158
    %v1197 = vpop.f32.mrf.mxu0
    %v1198 = vadd.f32 0.0, %v1197
    %v1199 = vpop.f32.mrf.mxu0
    %v1200 = vpop.f32.mrf.mxu0
    %v1201 = vpop.f32.mrf.mxu0
    %1202 = vdwg.mxu0
    %1203 = vrot.lane.b32.xlu0 %v401, 64
    %v1204 = vpop.permute.xlu0 %1203
    %v1206 = vsel %vm406, %v912, 0
    %v1209 = vsel %vm919, %v1204, 0
    %1211 = vmatprep.subr.bf16.mxu0 0
    %1212 = vmatpush1.bf16.msra.mxu0 0
    %1213 = vmatprep.subr.bf16.mxu0 0
    %1214 = vmatpush1.bf16.msra.mxu0 0
    %1215 = vmatprep.subr.bf16.mxu0 0
    %1216 = vmatpush1.bf16.msra.mxu0 0
    %1217 = vmatprep.subr.bf16.mxu0 0
    %1218 = vmatpush1.bf16.msra.mxu0 0
    %1219 = vmatprep.subr.bf16.mxu0 0
    %1220 = vmatpush1.bf16.msra.mxu0 0
    %1221 = vmatprep.subr.bf16.mxu0 0
    %1222 = vmatpush1.bf16.msra.mxu0 0
    %1223 = vmatprep.subr.bf16.mxu0 0
    %1224 = vmatpush1.bf16.msra.mxu0 0
    %1225 = vmatprep.subr.bf16.mxu0 0
    %1226 = vmatpush1.bf16.msra.mxu0 %v1209
    %1227 = vmatprep.subr.bf16.mxu0 0
    %1228 = vmatpush2.bf16.msra.mxu0 0
    %1229 = vmatprep.subr.bf16.mxu0 0
    %1230 = vmatpush2.bf16.msra.mxu0 0
    %1231 = vmatprep.subr.bf16.mxu0 0
    %1232 = vmatpush2.bf16.msra.mxu0 0
    %1233 = vmatprep.subr.bf16.mxu0 0
    %1234 = vmatpush2.bf16.msra.mxu0 0
    %1235 = vmatprep.subr.bf16.mxu0 0
    %1236 = vmatpush2.bf16.msra.mxu0 0
    %1237 = vmatprep.subr.bf16.mxu0 0
    %1238 = vmatpush2.bf16.msra.mxu0 0
    %1239 = vmatprep.subr.bf16.mxu0 0
    %1240 = vmatpush2.bf16.msra.mxu0 0
    %1241 = vmatprep.subr.bf16.mxu0 0
    %1242 = vmatpush2.bf16.msra.mxu0 0
    %1243 = vmatprep.mubr.bf16.mxu0 0
    %1244 = vmatmul.mubr.bf16.gmra.mxu0 %v1206
    %v1245 = vpop.f32.mrf.mxu0
    %v1246 = vadd.f32 0.0, %v1245
    %v1247 = vpop.f32.mrf.mxu0
    %v1248 = vpop.f32.mrf.mxu0
    %v1249 = vpop.f32.mrf.mxu0
    %1250 = vdwg.mxu0
    %1251 = vrot.lane.b32.xlu0 %v402, 64
    %v1252 = vpop.permute.xlu0 %1251
    %v1254 = vsel %vm406, %v913, 0
    %v1257 = vsel %vm919, %v1252, 0
    %1259 = vmatprep.subr.bf16.mxu0 0
    %1260 = vmatpush1.bf16.msra.mxu0 0
    %1261 = vmatprep.subr.bf16.mxu0 0
    %1262 = vmatpush1.bf16.msra.mxu0 0
    %1263 = vmatprep.subr.bf16.mxu0 0
    %1264 = vmatpush1.bf16.msra.mxu0 0
    %1265 = vmatprep.subr.bf16.mxu0 0
    %1266 = vmatpush1.bf16.msra.mxu0 0
    %1267 = vmatprep.subr.bf16.mxu0 0
    %1268 = vmatpush1.bf16.msra.mxu0 0
    %1269 = vmatprep.subr.bf16.mxu0 0
    %1270 = vmatpush1.bf16.msra.mxu0 0
    %1271 = vmatprep.subr.bf16.mxu0 0
    %1272 = vmatpush1.bf16.msra.mxu0 0
    %1273 = vmatprep.subr.bf16.mxu0 0
    %1274 = vmatpush1.bf16.msra.mxu0 %v1257
    %1275 = vmatprep.subr.bf16.mxu0 0
    %1276 = vmatpush2.bf16.msra.mxu0 0
    %1277 = vmatprep.subr.bf16.mxu0 0
    %1278 = vmatpush2.bf16.msra.mxu0 0
    %1279 = vmatprep.subr.bf16.mxu0 0
    %1280 = vmatpush2.bf16.msra.mxu0 0
    %1281 = vmatprep.subr.bf16.mxu0 0
    %1282 = vmatpush2.bf16.msra.mxu0 0
    %1283 = vmatprep.subr.bf16.mxu0 0
    %1284 = vmatpush2.bf16.msra.mxu0 0
    %1285 = vmatprep.subr.bf16.mxu0 0
    %1286 = vmatpush2.bf16.msra.mxu0 0
    %1287 = vmatprep.subr.bf16.mxu0 0
    %1288 = vmatpush2.bf16.msra.mxu0 0
    %1289 = vmatprep.subr.bf16.mxu0 0
    %1290 = vmatpush2.bf16.msra.mxu0 0
    %1291 = vmatprep.mubr.bf16.mxu0 0
    %1292 = vmatmul.mubr.bf16.gmra.mxu0 %v1254
    %v1293 = vpop.f32.mrf.mxu0
    %v1294 = vadd.f32 0.0, %v1293
    %v1295 = vpop.f32.mrf.mxu0
    %v1296 = vpop.f32.mrf.mxu0
    %v1297 = vpop.f32.mrf.mxu0
    %1298 = vdwg.mxu0
    %1301 = vrot.lane.b32.xlu0 %v1006, 8
    %v1302 = vpop.permute.xlu0 %1301
    %1303 = vrot.lane.b32.xlu0 %v1198, 8
    %v1304 = vpop.permute.xlu0 %1303
    %1309 = vrot.lane.b32.xlu0 %v1054, 16
    %v1310 = vpop.permute.xlu0 %1309
    %1311 = vrot.lane.b32.xlu0 %v1246, 16
    %v1312 = vpop.permute.xlu0 %1311
    %1317 = vrot.lane.b32.xlu0 %v1102, 24
    %v1318 = vpop.permute.xlu0 %1317
    %1319 = vrot.lane.b32.xlu0 %v1294, 24
    %v1320 = vpop.permute.xlu0 %1319
    %v1323 = vsel %vm406, %v958, %v1302
    %v1324 = vsel %vm406, %v1150, %v1304
    %vm1325 = vcmask 130048
    %v1326 = vsel %vm1325, %v1323, %v1310
    %v1327 = vsel %vm1325, %v1324, %v1312
    %vm1328 = vcmask 195584
    %v1329 = vsel %vm1328, %v1326, %v1318
    %v1330 = vsel %vm1328, %v1327, %v1320
    %v1331 = vpack.c.bf16 %v1330, %v1329
    %v1332 = vlaneseq
    %v1333 = vshrl.u32 %v1332, 7
    %v1334 = vsub.s32 0, %v1333
    %v1335 = vrot.slane %v113, %v1334
    %v1340 = vunpack.c.l.b16 %v93
    %v1341 = vunpack.c.l.b16 %v94
    %v1342 = vunpack.c.l.b16 %v95
    %v1343 = vunpack.c.l.b16 %v96
    %v1344 = vpack.c.b16 %v1341, %v1340
    %v1345 = vpack.c.b16 %v1343, %v1342
    %v1349 = vsel %vm139, %v1331, 0
    %1351 = vmatprep.subr.bf16.mxu0 0
    %1352 = vmatpush1.bf16.msra.mxu0 0
    %1353 = vmatprep.subr.bf16.mxu0 0
    %1354 = vmatpush1.bf16.msra.mxu0 0
    %1355 = vmatprep.subr.bf16.mxu0 0
    %1356 = vmatpush1.bf16.msra.mxu0 0
    %1357 = vmatprep.subr.bf16.mxu0 0
    %1358 = vmatpush1.bf16.msra.mxu0 0
    %1359 = vmatprep.subr.bf16.mxu0 0
    %1360 = vmatpush1.bf16.msra.mxu0 0
    %1361 = vmatprep.subr.bf16.mxu0 0
    %1362 = vmatpush1.bf16.msra.mxu0 0
    %1363 = vmatprep.subr.bf16.mxu0 0
    %1364 = vmatpush1.bf16.msra.mxu0 %v1345
    %1365 = vmatprep.subr.bf16.mxu0 0
    %1366 = vmatpush1.bf16.msra.mxu0 %v1344
    %1367 = vmatprep.subr.bf16.mxu0 0
    %1368 = vmatpush2.bf16.msra.mxu0 0
    %1369 = vmatprep.subr.bf16.mxu0 0
    %1370 = vmatpush2.bf16.msra.mxu0 0
    %1371 = vmatprep.subr.bf16.mxu0 0
    %1372 = vmatpush2.bf16.msra.mxu0 0
    %1373 = vmatprep.subr.bf16.mxu0 0
    %1374 = vmatpush2.bf16.msra.mxu0 0
    %1375 = vmatprep.subr.bf16.mxu0 0
    %1376 = vmatpush2.bf16.msra.mxu0 0
    %1377 = vmatprep.subr.bf16.mxu0 0
    %1378 = vmatpush2.bf16.msra.mxu0 0
    %1379 = vmatprep.subr.bf16.mxu0 0
    %1380 = vmatpush2.bf16.msra.mxu0 0
    %1381 = vmatprep.subr.bf16.mxu0 0
    %1382 = vmatpush2.bf16.msra.mxu0 0
    %1383 = vmatprep.mubr.bf16.mxu0 0
    %1384 = vmatmul.mubr.bf16.gmra.mxu0 %v1349
    %v1385 = vpop.f32.mrf.mxu0
    %v1386 = vadd.f32 %v1335, %v1385
    %v1387 = vpop.f32.mrf.mxu0
    %v1388 = vpop.f32.mrf.mxu0
    %v1389 = vadd.f32 %v1335, %v1388
    %v1390 = vpop.f32.mrf.mxu0
    %1391 = vdwg.mxu0
    %v1392 = vadd.f32 %v1386, %v312
    %v1393 = vadd.f32 %v1389, %v313
    %v1394 = vsel %vm139, %v1392, 0.0
    %1395 = vadd.xlane.f32.xlu0 %v1394
    %v1396 = vpop.xlane.xlu0 %1395
    %v1397 = vsel %vm139, %v1393, 0.0
    %1398 = vadd.xlane.f32.xlu0 %v1397
    %v1399 = vpop.xlane.xlu0 %1398
    %v1400 = vrcp.pop 32.0
    %v1401 = vmul.f32 %v1396, %v1400
    %v1402 = vmul.f32 %v1399, %v1400
    %v1403 = vsub.f32 %v1392, %v1401
    %v1404 = vsub.f32 %v1393, %v1402
    %v1405 = vmul.f32 %v1403, %v1403
    %v1406 = vmul.f32 %v1404, %v1404
    %v1407 = vsel %vm139, %v1405, 0.0
    %1408 = vadd.xlane.f32.xlu0 %v1407
    %v1409 = vpop.xlane.xlu0 %1408
    %v1410 = vsel %vm139, %v1406, 0.0
    %1411 = vadd.xlane.f32.xlu0 %v1410
    %v1412 = vpop.xlane.xlu0 %1411
    %v1413 = vmul.f32 %v1409, 0.032258064
    %v1414 = vmul.f32 %v1412, 0.032258064
    %v1415 = vlaneseq
    %v1416 = vshrl.u32 %v1415, 7
    %v1417 = vsub.s32 0, %v1416
    %v1418 = vrot.slane %v114, %v1417
    %v1419 = vmul.f32 %v1418, %v1403
    %v1420 = vmul.f32 %v1418, %v1404
    %v1421 = vrsqrt.pop %v1413
    %v1422 = vmul.f32 %v1413, %v1421
    %vm1423 = vcmp.eq.f32.partialorder %v1413, inf
    %v1424 = vsel %vm1423, %v1413, %v1422
    %vm1425 = vcmp.eq.f32.partialorder %v1413, 0.0
    %v1426 = vand.u32 %v1413, 2147483648
    %v1427 = vsel %vm1425, %v1426, %v1424
    %v1428 = vrsqrt.pop %v1414
    %v1429 = vmul.f32 %v1414, %v1428
    %vm1430 = vcmp.eq.f32.partialorder %v1414, inf
    %v1431 = vsel %vm1430, %v1414, %v1429
    %vm1432 = vcmp.eq.f32.partialorder %v1414, 0.0
    %v1433 = vand.u32 %v1414, 2147483648
    %v1434 = vsel %vm1432, %v1433, %v1431
    %v1435 = vadd.f32 %v1427, 1e-06
    %v1436 = vadd.f32 %v1434, 1e-06
    %v1437 = vrcp.pop %v1435
    %v1438 = vmul.f32 %v1419, %v1437
    %v1439 = vrcp.pop %v1436
    %v1440 = vmul.f32 %v1420, %v1439
    %v1441 = vlaneseq
    %v1442 = vshrl.u32 %v1441, 7
    %v1443 = vsub.s32 0, %v1442
    %v1444 = vrot.slane %v115, %v1443
    %v1445 = vadd.f32 %v1438, %v1444
    %v1446 = vadd.f32 %v1440, %v1444
    %v1447 = vsel %vm139, %v1445, 0.0
    %1448 = vadd.xlane.f32.xlu0 %v1447
    %v1449 = vpop.xlane.xlu0 %1448
    %v1450 = vsel %vm139, %v1446, 0.0
    %1451 = vadd.xlane.f32.xlu0 %v1450
    %v1452 = vpop.xlane.xlu0 %1451
    %v1453 = vmul.f32 %v1449, %v1400
    %v1454 = vmul.f32 %v1452, %v1400
    %v1455 = vsub.f32 %v1445, %v1453
    %v1456 = vsub.f32 %v1446, %v1454
    %v1457 = vmul.f32 %v1455, %v1455
    %v1458 = vmul.f32 %v1456, %v1456
    %v1459 = vsel %vm139, %v1457, 0.0
    %1460 = vadd.xlane.f32.xlu0 %v1459
    %v1461 = vpop.xlane.xlu0 %1460
    %v1462 = vsel %vm139, %v1458, 0.0
    %1463 = vadd.xlane.f32.xlu0 %v1462
    %v1464 = vpop.xlane.xlu0 %1463
    %v1465 = vmul.f32 %v1461, 0.032258064
    %v1466 = vmul.f32 %v1464, 0.032258064
    %v1467 = vlaneseq
    %v1468 = vshrl.u32 %v1467, 7
    %v1469 = vsub.s32 0, %v1468
    %v1470 = vrot.slane %v116, %v1469
    %v1471 = vmul.f32 %v1470, %v1455
    %v1472 = vmul.f32 %v1470, %v1456
    %v1473 = vrsqrt.pop %v1465
    %v1474 = vmul.f32 %v1465, %v1473
    %vm1475 = vcmp.eq.f32.partialorder %v1465, inf
    %v1476 = vsel %vm1475, %v1465, %v1474
    %vm1477 = vcmp.eq.f32.partialorder %v1465, 0.0
    %v1478 = vand.u32 %v1465, 2147483648
    %v1479 = vsel %vm1477, %v1478, %v1476
    %v1480 = vrsqrt.pop %v1466
    %v1481 = vmul.f32 %v1466, %v1480
    %vm1482 = vcmp.eq.f32.partialorder %v1466, inf
    %v1483 = vsel %vm1482, %v1466, %v1481
    %vm1484 = vcmp.eq.f32.partialorder %v1466, 0.0
    %v1485 = vand.u32 %v1466, 2147483648
    %v1486 = vsel %vm1484, %v1485, %v1483
    %v1487 = vadd.f32 %v1479, 1e-06
    %v1488 = vadd.f32 %v1486, 1e-06
    %v1489 = vrcp.pop %v1487
    %v1490 = vmul.f32 %v1471, %v1489
    %v1491 = vrcp.pop %v1488
    %v1492 = vmul.f32 %v1472, %v1491
    %v1493 = vlaneseq
    %v1494 = vshrl.u32 %v1493, 7
    %v1495 = vsub.s32 0, %v1494
    %v1496 = vrot.slane %v117, %v1495
    %v1497 = vadd.f32 %v1490, %v1496
    %v1498 = vadd.f32 %v1492, %v1496
    %v1499 = vpack.c.bf16 %v1498, %v1497
    %v1500 = vlaneseq
    %v1501 = vshrl.u32 %v1500, 7
    %v1502 = vsub.s32 0, %v1501
    %v1503 = vrot.slane %v118, %v1502
    %v1508 = vunpack.c.l.b16 %v97
    %v1509 = vunpack.c.l.b16 %v98
    %v1510 = vunpack.c.l.b16 %v99
    %v1511 = vunpack.c.l.b16 %v100
    %v1512 = vpack.c.b16 %v1509, %v1508
    %v1513 = vpack.c.b16 %v1511, %v1510
    %v1517 = vsel %vm139, %v1499, 0
    %1519 = vmatprep.subr.bf16.mxu0 0
    %1520 = vmatpush1.bf16.msra.mxu0 0
    %1521 = vmatprep.subr.bf16.mxu0 0
    %1522 = vmatpush1.bf16.msra.mxu0 0
    %1523 = vmatprep.subr.bf16.mxu0 0
    %1524 = vmatpush1.bf16.msra.mxu0 0
    %1525 = vmatprep.subr.bf16.mxu0 0
    %1526 = vmatpush1.bf16.msra.mxu0 0
    %1527 = vmatprep.subr.bf16.mxu0 0
    %1528 = vmatpush1.bf16.msra.mxu0 0
    %1529 = vmatprep.subr.bf16.mxu0 0
    %1530 = vmatpush1.bf16.msra.mxu0 0
    %1531 = vmatprep.subr.bf16.mxu0 0
    %1532 = vmatpush1.bf16.msra.mxu0 %v1513
    %1533 = vmatprep.subr.bf16.mxu0 0
    %1534 = vmatpush1.bf16.msra.mxu0 %v1512
    %1535 = vmatprep.subr.bf16.mxu0 0
    %1536 = vmatpush2.bf16.msra.mxu0 0
    %1537 = vmatprep.subr.bf16.mxu0 0
    %1538 = vmatpush2.bf16.msra.mxu0 0
    %1539 = vmatprep.subr.bf16.mxu0 0
    %1540 = vmatpush2.bf16.msra.mxu0 0
    %1541 = vmatprep.subr.bf16.mxu0 0
    %1542 = vmatpush2.bf16.msra.mxu0 0
    %1543 = vmatprep.subr.bf16.mxu0 0
    %1544 = vmatpush2.bf16.msra.mxu0 0
    %1545 = vmatprep.subr.bf16.mxu0 0
    %1546 = vmatpush2.bf16.msra.mxu0 0
    %1547 = vmatprep.subr.bf16.mxu0 0
    %1548 = vmatpush2.bf16.msra.mxu0 0
    %1549 = vmatprep.subr.bf16.mxu0 0
    %1550 = vmatpush2.bf16.msra.mxu0 0
    %1551 = vmatprep.mubr.bf16.mxu0 0
    %1552 = vmatmul.mubr.bf16.gmra.mxu0 %v1517
    %v1553 = vpop.f32.mrf.mxu0
    %v1554 = vadd.f32 %v1503, %v1553
    %v1555 = vpop.f32.mrf.mxu0
    %v1556 = vpop.f32.mrf.mxu0
    %v1557 = vadd.f32 %v1503, %v1556
    %v1558 = vpop.f32.mrf.mxu0
    %1559 = vdwg.mxu0
    %v1560 = vmax.f32 %v1554, 0.0
    %v1561 = vmax.f32 %v1557, 0.0
    %v1562 = vpack.c.bf16 %v1561, %v1560
    %v1563 = vlaneseq
    %v1564 = vshrl.u32 %v1563, 7
    %v1565 = vsub.s32 0, %v1564
    %v1566 = vrot.slane %v119, %v1565
    %v1575 = vunpack.c.l.b16 %v101
    %v1576 = vunpack.c.l.b16 %v102
    %v1577 = vunpack.c.l.b16 %v103
    %v1578 = vunpack.c.l.b16 %v104
    %v1579 = vunpack.c.l.b16 %v105
    %v1580 = vunpack.c.l.b16 %v106
    %v1581 = vunpack.c.l.b16 %v107
    %v1582 = vunpack.c.l.b16 %v108
    %v1583 = vpack.c.b16 %v1576, %v1575
    %v1584 = vpack.c.b16 %v1578, %v1577
    %v1585 = vpack.c.b16 %v1580, %v1579
    %v1586 = vpack.c.b16 %v1582, %v1581
    %vm1591 = vcmask 523264
    %v1593 = vsel %vm1591, %v1562, 0
    %1595 = vmatprep.subr.bf16.mxu0 0
    %1596 = vmatpush1.bf16.msra.mxu0 0
    %1597 = vmatprep.subr.bf16.mxu0 0
    %1598 = vmatpush1.bf16.msra.mxu0 0
    %1599 = vmatprep.subr.bf16.mxu0 0
    %1600 = vmatpush1.bf16.msra.mxu0 0
    %1601 = vmatprep.subr.bf16.mxu0 0
    %1602 = vmatpush1.bf16.msra.mxu0 0
    %1603 = vmatprep.subr.bf16.mxu0 0
    %1604 = vmatpush1.bf16.msra.mxu0 %v1586
    %1605 = vmatprep.subr.bf16.mxu0 0
    %1606 = vmatpush1.bf16.msra.mxu0 %v1585
    %1607 = vmatprep.subr.bf16.mxu0 0
    %1608 = vmatpush1.bf16.msra.mxu0 %v1584
    %1609 = vmatprep.subr.bf16.mxu0 0
    %1610 = vmatpush1.bf16.msra.mxu0 %v1583
    %1611 = vmatprep.subr.bf16.mxu0 0
    %1612 = vmatpush2.bf16.msra.mxu0 0
    %1613 = vmatprep.subr.bf16.mxu0 0
    %1614 = vmatpush2.bf16.msra.mxu0 0
    %1615 = vmatprep.subr.bf16.mxu0 0
    %1616 = vmatpush2.bf16.msra.mxu0 0
    %1617 = vmatprep.subr.bf16.mxu0 0
    %1618 = vmatpush2.bf16.msra.mxu0 0
    %1619 = vmatprep.subr.bf16.mxu0 0
    %1620 = vmatpush2.bf16.msra.mxu0 0
    %1621 = vmatprep.subr.bf16.mxu0 0
    %1622 = vmatpush2.bf16.msra.mxu0 0
    %1623 = vmatprep.subr.bf16.mxu0 0
    %1624 = vmatpush2.bf16.msra.mxu0 0
    %1625 = vmatprep.subr.bf16.mxu0 0
    %1626 = vmatpush2.bf16.msra.mxu0 0
    %1627 = vmatprep.mubr.bf16.mxu0 0
    %1628 = vmatmul.mubr.bf16.gmra.mxu0 %v1593
    %v1629 = vpop.f32.mrf.mxu0
    %v1630 = vadd.f32 %v1566, %v1629
    %v1631 = vpop.f32.mrf.mxu0
    %v1632 = vpop.f32.mrf.mxu0
    %v1633 = vadd.f32 %v1566, %v1632
    %v1634 = vpop.f32.mrf.mxu0
    %1635 = vdwg.mxu0
    %v1636 = vadd.f32 %v1630, %v1445
    %v1637 = vadd.f32 %v1633, %v1446
    %1638 = vst.msk [vmem:[#allocation10] sm:$0xff] %vm139, %v1636
    %1639 = vst.msk [vmem:[#allocation10 + $0x8] sm:$0xff] %vm139, %v1637
    // Predicated region
    $region34: #{tpu_custom_call.1} parent=1 // pred_check
      _
    $region35: #{tpu_custom_call.1} parent=1 // pred_check_branch
      %1641 = sbr.rel (0) target = $region37
    $region36: #{tpu_custom_call.1} parent=1 // pred_region
      %s1643 = ssub.s32 256, 256
      %1644 = vsyncadd [#allocation4], %s1643
      %s1645 = sshll.u32 [#allocation10], 4
      %s1646 = int_to_ptr.vmem [resolvable:$true] %s1645
      %1651 = dma.vmem_to_hbm [thread:$0]  %s1646, 256, %s4, [#allocation4], 128, 128, 8
    $region37: #{tpu_custom_call.1} parent=1 // pred_fallthru
      _
    // Predicated region
    $region38: #{tpu_custom_call.1} parent=1 // pred_check
      _
    $region39: #{tpu_custom_call.1} parent=1 // pred_check_branch
      %1653 = sbr.rel (0) target = $region41
    $region40: #{tpu_custom_call.1} parent=1 // pred_region
      %s1655 = ssub.s32 1024, 1024
      %1656 = vsyncadd [#allocation12], %s1655
      %s1657 = sshll.u32 [#allocation11], 4
      %s1658 = int_to_ptr.vmem [resolvable:$true] %s1657
      %1663 = dma.vmem_to_hbm [thread:$0]  %s1658, 1024, %s5, [#allocation12], 128, 128, 8
    $region41: #{tpu_custom_call.1} parent=1 // pred_fallthru
      _
    // Predicated region
    $region42: #{tpu_custom_call.1} parent=1 // pred_check
      _
    $region43: #{tpu_custom_call.1} parent=1 // pred_check_branch
      %1665 = sbr.rel (0) target = $region45
    $region44: #{tpu_custom_call.1} parent=1 // pred_region
      %1666 = dma.done [#allocation4], 256
    $region45: #{tpu_custom_call.1} parent=1 // pred_fallthru
      _
    // Predicated region
    $region46: #{tpu_custom_call.1} parent=1 // pred_check
      _
    $region47: #{tpu_custom_call.1} parent=1 // pred_check_branch
      %1668 = sbr.rel (0) target = $region49
    $region48: #{tpu_custom_call.1} parent=1 // pred_region
      %1669 = dma.done [#allocation12], 1024
    $region49: #{tpu_custom_call.1} parent=1 // pred_fallthru
      _
    %1670 = vsyncpa [#allocation3], 1
    %1671 = vsyncpa [#allocation6], 1
    %1672 = vsyncpa [#allocation9], 1
    %1673 = vsyncpa [#allocation4], 1
    %1674 = vsyncpa [#allocation12], 1

</llo_original>
